<compile_context>
chip_gen: v7x
topology: tpu7x:2x2x1
jax: 0.10.0
libtpu: 0.0.40
codegen_flags: <defaults>
</compile_context>

<pallas_src>
import jax
import jax.numpy as jnp
from jax import lax
from jax.experimental import pallas as pl
from jax.experimental.pallas import tpu as pltpu


def conv_module_forward(x_nchw, w_oihw, gamma, beta, run_mean, run_var,
                        *, kernel_size=1, padding=0, eps=1e-3,
                        compute_dtype=jnp.bfloat16, out_dtype=jnp.float32,
                        approx_sigmoid=False):
    """Forward of ConvModule: conv(bias=False, stride=1) -> BN(eval) -> SiLU."""
    N, Cin, H, W = x_nchw.shape
    Cout, Cin_w, kh, kw = w_oihw.shape
    k, p = int(kernel_size), int(padding)
    assert (kh, kw) == (k, k) and Cin_w == Cin, \
        "ConvModule exposes only kernel_size/padding: stride=1, dilation=1, groups=1"
    Ho = H + 2 * p - k + 1
    Wo = W + 2 * p - k + 1
    kk = k * k
    Mimg = Ho * Wo
    Kdim = kk * Cin
    Coutp = -(-Cout // 8) * 8            # pad Cout to a sublane multiple of 8

    # ---- host-side glue (tiny): NCHW -> NHWC + MXU dtype cast ----------------
    x = jnp.transpose(x_nchw, (0, 2, 3, 1)).astype(compute_dtype)

    # ---- weight -> (Coutp, k*k*Cin); BN scale/bias kept separate in f32 ------
    # last-dim order (dy, dx, c) must match the im2col column order below.
    w2 = jnp.transpose(w_oihw, (0, 2, 3, 1)).reshape(Cout, Kdim)
    w2 = jnp.pad(w2, ((0, Coutp - Cout), (0, 0))).astype(compute_dtype)
    scale = (gamma / jnp.sqrt(run_var + eps)).astype(jnp.float32)
    bias = (beta - run_mean * scale).astype(jnp.float32)
    scale = jnp.pad(scale, (0, Coutp - Cout)).reshape(Coutp, 1)
    bias = jnp.pad(bias, (0, Coutp - Cout)).reshape(Coutp, 1)

    # ---- Pallas kernel: fused pad + im2col + one matmul + BN + SiLU ----------
    def kernel(x_ref, w_ref, s_ref, b_ref, o_ref, col_ref):
        # x_ref  : (1, H, W, Cin)       compute_dtype
        # w_ref  : (Coutp, k*k*Cin)     compute_dtype (resident)
        # s_ref  : (Coutp, 1)           f32           (resident)
        # b_ref  : (Coutp, 1)           f32           (resident)
        # o_ref  : (1, Coutp, Ho*Wo)    out_dtype     (lane-dense: Ho*Wo on lanes)
        # col_ref: (Ho, Wo, k*k*Cin)    compute_dtype  im2col scratch
        if p > 0:  # halo (padding) taps must contribute exact zeros
            col_ref[...] = jnp.zeros(col_ref.shape, col_ref.dtype)
        # Fused zero-pad + im2col: one compaction copy per tap, all-static slices.
        for dy in range(k):
            for dx in range(k):
                t = dy * k + dx
                oh0, oh1 = max(0, p - dy), min(Ho, H + p - dy)
                ow0, ow1 = max(0, p - dx), min(Wo, W + p - dx)
                if oh1 <= oh0 or ow1 <= ow0:
                    continue
                ih0, iw0 = oh0 + dy - p, ow0 + dx - p
                col_ref[oh0:oh1, ow0:ow1, t * Cin:(t + 1) * Cin] = (
                    x_ref[0, ih0:ih0 + (oh1 - oh0), iw0:iw0 + (ow1 - ow0), :])
        col = col_ref[...].reshape(Mimg, Kdim)
        # Single MXU matmul, K = k*k*Cin, "A @ B.T" (q.k^T) form -> (Coutp, Mimg)
        acc = lax.dot_general(w_ref[...], col,
                              dimension_numbers=(((1,), (1,)), ((), ())),
                              preferred_element_type=jnp.float32)
        y = acc * s_ref[...] + b_ref[...]                   # BN (eval) in f32
        e = jnp.exp(-y)                                     # EUP
        if approx_sigmoid:
            sig = pl.reciprocal(1.0 + e, approx=True)       # faster, ~1e-3 rel err
        else:
            sig = 1.0 / (1.0 + e)                           # exact sigmoid
        o_ref[...] = (y * sig)[None].astype(o_ref.dtype)

    out = pl.pallas_call(
        kernel,
        out_shape=jax.ShapeDtypeStruct((N, Coutp, Mimg), out_dtype),
        grid_spec=pltpu.PrefetchScalarGridSpec(
            num_scalar_prefetch=0,
            grid=(N,),
            in_specs=[
                pl.BlockSpec((1, H, W, Cin), lambda n: (n, 0, 0, 0)),   # image
                pl.BlockSpec((Coutp, Kdim), lambda n: (0, 0)),          # weight (resident)
                pl.BlockSpec((Coutp, 1), lambda n: (0, 0)),             # BN scale
                pl.BlockSpec((Coutp, 1), lambda n: (0, 0)),             # BN bias
            ],
            out_specs=pl.BlockSpec((1, Coutp, Mimg), lambda n: (n, 0, 0)),
            scratch_shapes=[pltpu.VMEM((Ho, Wo, Kdim), compute_dtype)],
        ),
        compiler_params=pltpu.CompilerParams(
            dimension_semantics=("parallel",)),
    )(x, w2, scale, bias)

    # Output is already NCHW-ordered: drop channel padding, split Ho*Wo. No transpose.
    return out[:, :Cout, :].reshape(N, Cout, Ho, Wo)


def _reference(x, w, gamma, beta, run_mean, run_var, *, padding, eps=1e-3):
    y = lax.conv_general_dilated(
        x, w, window_strides=(1, 1),
        padding=[(padding, padding), (padding, padding)],
        dimension_numbers=("NCHW", "OIHW", "NCHW"))
    sc = gamma / jnp.sqrt(run_var + eps)
    bs = beta - run_mean * sc
    y = y * sc[None, :, None, None] + bs[None, :, None, None]
    return y * jax.nn.sigmoid(y)


if __name__ == "__main__":
    def run_case(case_idx, N, Cin, H, W, Cout, ksize, pad):
        ks = jax.random.split(jax.random.fold_in(jax.random.PRNGKey(0), case_idx), 6)
        x = jax.random.normal(ks[0], (N, Cin, H, W), dtype=jnp.float32)
        w = jax.random.normal(ks[1], (Cout, Cin, ksize, ksize), dtype=jnp.float32) * 0.1
        # Quantize operands to bf16-representable values so the bf16 MXU path and
        # the f32 reference see identical inputs (isolates kernel error).
        x = x.astype(jnp.bfloat16).astype(jnp.float32)
        w = w.astype(jnp.bfloat16).astype(jnp.float32)
        gamma = 1.0 + 0.1 * jax.random.normal(ks[2], (Cout,), dtype=jnp.float32)
        beta = 0.1 * jax.random.normal(ks[3], (Cout,), dtype=jnp.float32)
        mean = 0.1 * jax.random.normal(ks[4], (Cout,), dtype=jnp.float32)
        var = jnp.abs(jax.random.normal(ks[5], (Cout,), dtype=jnp.float32)) + 0.5

        ref = _reference(x, w, gamma, beta, mean, var, padding=pad, eps=1e-3)

        # Exact-parity path: f32 store, exact sigmoid, BN applied in f32 epilogue.
        out = conv_module_forward(x, w, gamma, beta, mean, var,
                                  kernel_size=ksize, padding=pad, eps=1e-3,
                                  out_dtype=jnp.float32)
        out = jax.block_until_ready(out)
        assert out.shape == ref.shape, (out.shape, ref.shape)
        err = float(jnp.max(jnp.abs(out - ref)))
        assert err < 1e-3, f"f32-out max abs err {err}"

        # Bandwidth path: bf16 store (halves writeback); only output bf16
        # quantization (~2^-9 relative) separates it from the f32 reference.
        out_bf = conv_module_forward(x, w, gamma, beta, mean, var,
                                     kernel_size=ksize, padding=pad, eps=1e-3,
                                     out_dtype=jnp.bfloat16)
        out_bf = jax.block_until_ready(out_bf).astype(jnp.float32)
        err_bf = float(jnp.max(jnp.abs(out_bf - ref)))
        assert err_bf < 5e-2, f"bf16-out max abs err {err_bf}"

    run_case(0, N=2, Cin=4, H=16, W=16, Cout=8, ksize=3, pad=1)   # 3x3 conv, pad 1
    run_case(1, N=2, Cin=4, H=16, W=16, Cout=16, ksize=1, pad=0)  # ConvModule default 1x1
    print("KERNEL_OK")
</pallas_src>

<mosaic_0001>
module attributes {stable_mosaic.version = 11 : i64} {
  func.func @kernel(%arg0: i32, %arg1: memref<1x16x16x4xbf16, #tpu.memory_space<vmem>>, %arg2: memref<8x36xbf16, #tpu.memory_space<vmem>>, %arg3: memref<8x1xf32, #tpu.memory_space<vmem>>, %arg4: memref<8x1xf32, #tpu.memory_space<vmem>>, %arg5: memref<1x8x256xf32, #tpu.memory_space<vmem>>, %arg6: memref<16x16x36xbf16, #tpu.memory_space<vmem>>) attributes {dimension_semantics = [#tpu.dimension_semantics<parallel>], iteration_bounds = array<i64: 2>, scalar_prefetch = 0 : i64, scratch_operands = 1 : i64, tpu.core_type = #tpu.core_type<tc>, window_params = [{transform_indices = @transform_0, window_bounds = array<i64: 1, 16, 16, 4>}, {pipeline_mode = #tpu.pipeline_mode<synchronous>, transform_indices = @transform_1, window_bounds = array<i64: 8, 36>}, {pipeline_mode = #tpu.pipeline_mode<synchronous>, transform_indices = @transform_2, window_bounds = array<i64: 8, 1>}, {pipeline_mode = #tpu.pipeline_mode<synchronous>, transform_indices = @transform_3, window_bounds = array<i64: 8, 1>}, {transform_indices = @transform_4, window_bounds = array<i64: 1, 8, 256>}]} {
    %cst = arith.constant 0.000000e+00 : bf16
    %0 = vector.broadcast %cst : bf16 to vector<16x16x36xbf16>
    %c0 = arith.constant 0 : index
    %c0_0 = arith.constant 0 : index
    %c0_1 = arith.constant 0 : index
    %1 = vector.load %arg6[%c0, %c0_0, %c0_1] : memref<16x16x36xbf16, #tpu.memory_space<vmem>>, vector<16x16x36xbf16>
    tpu.vector_store %arg6[%c0, %c0_0, %c0_1], %0 {strides = array<i32>} : memref<16x16x36xbf16, #tpu.memory_space<vmem>>, vector<16x16x36xbf16>,
    %c0_2 = arith.constant 0 : index
    %c0_3 = arith.constant 0 : index
    %c0_4 = arith.constant 0 : index
    %c0_5 = arith.constant 0 : index
    %2 = vector.load %arg1[%c0_2, %c0_3, %c0_4, %c0_5] : memref<1x16x16x4xbf16, #tpu.memory_space<vmem>>, vector<1x15x15x4xbf16>
    %3 = vector.shape_cast %2 : vector<1x15x15x4xbf16> to vector<15x15x4xbf16>
    %c1 = arith.constant 1 : index
    %c1_6 = arith.constant 1 : index
    %c0_7 = arith.constant 0 : index
    %4 = vector.load %arg6[%c1, %c1_6, %c0_7] : memref<16x16x36xbf16, #tpu.memory_space<vmem>>, vector<15x15x4xbf16>
    tpu.vector_store %arg6[%c1, %c1_6, %c0_7], %3 {strides = array<i32>} : memref<16x16x36xbf16, #tpu.memory_space<vmem>>, vector<15x15x4xbf16>,
    %c0_8 = arith.constant 0 : index
    %c0_9 = arith.constant 0 : index
    %c0_10 = arith.constant 0 : index
    %c0_11 = arith.constant 0 : index
    %5 = vector.load %arg1[%c0_8, %c0_9, %c0_10, %c0_11] : memref<1x16x16x4xbf16, #tpu.memory_space<vmem>>, vector<1x15x16x4xbf16>
    %6 = vector.shape_cast %5 : vector<1x15x16x4xbf16> to vector<15x16x4xbf16>
    %c1_12 = arith.constant 1 : index
    %c0_13 = arith.constant 0 : index
    %c4 = arith.constant 4 : index
    %7 = vector.load %arg6[%c1_12, %c0_13, %c4] : memref<16x16x36xbf16, #tpu.memory_space<vmem>>, vector<15x16x4xbf16>
    tpu.vector_store %arg6[%c1_12, %c0_13, %c4], %6 {strides = array<i32>} : memref<16x16x36xbf16, #tpu.memory_space<vmem>>, vector<15x16x4xbf16>,
    %c0_14 = arith.constant 0 : index
    %c0_15 = arith.constant 0 : index
    %c1_16 = arith.constant 1 : index
    %c0_17 = arith.constant 0 : index
    %8 = vector.load %arg1[%c0_14, %c0_15, %c1_16, %c0_17] : memref<1x16x16x4xbf16, #tpu.memory_space<vmem>>, vector<1x15x15x4xbf16>
    %9 = vector.shape_cast %8 : vector<1x15x15x4xbf16> to vector<15x15x4xbf16>
    %c1_18 = arith.constant 1 : index
    %c0_19 = arith.constant 0 : index
    %c8 = arith.constant 8 : index
    %10 = vector.load %arg6[%c1_18, %c0_19, %c8] : memref<16x16x36xbf16, #tpu.memory_space<vmem>>, vector<15x15x4xbf16>
    tpu.vector_store %arg6[%c1_18, %c0_19, %c8], %9 {strides = array<i32>} : memref<16x16x36xbf16, #tpu.memory_space<vmem>>, vector<15x15x4xbf16>,
    %c0_20 = arith.constant 0 : index
    %c0_21 = arith.constant 0 : index
    %c0_22 = arith.constant 0 : index
    %c0_23 = arith.constant 0 : index
    %11 = vector.load %arg1[%c0_20, %c0_21, %c0_22, %c0_23] : memref<1x16x16x4xbf16, #tpu.memory_space<vmem>>, vector<1x16x15x4xbf16>
    %12 = vector.shape_cast %11 : vector<1x16x15x4xbf16> to vector<16x15x4xbf16>
    %c0_24 = arith.constant 0 : index
    %c1_25 = arith.constant 1 : index
    %c12 = arith.constant 12 : index
    %13 = vector.load %arg6[%c0_24, %c1_25, %c12] : memref<16x16x36xbf16, #tpu.memory_space<vmem>>, vector<16x15x4xbf16>
    tpu.vector_store %arg6[%c0_24, %c1_25, %c12], %12 {strides = array<i32>} : memref<16x16x36xbf16, #tpu.memory_space<vmem>>, vector<16x15x4xbf16>,
    %c0_26 = arith.constant 0 : index
    %c0_27 = arith.constant 0 : index
    %c0_28 = arith.constant 0 : index
    %c0_29 = arith.constant 0 : index
    %14 = vector.load %arg1[%c0_26, %c0_27, %c0_28, %c0_29] : memref<1x16x16x4xbf16, #tpu.memory_space<vmem>>, vector<1x16x16x4xbf16>
    %15 = vector.shape_cast %14 : vector<1x16x16x4xbf16> to vector<16x16x4xbf16>
    %c0_30 = arith.constant 0 : index
    %c0_31 = arith.constant 0 : index
    %c16 = arith.constant 16 : index
    %16 = vector.load %arg6[%c0_30, %c0_31, %c16] : memref<16x16x36xbf16, #tpu.memory_space<vmem>>, vector<16x16x4xbf16>
    tpu.vector_store %arg6[%c0_30, %c0_31, %c16], %15 {strides = array<i32>} : memref<16x16x36xbf16, #tpu.memory_space<vmem>>, vector<16x16x4xbf16>,
    %c0_32 = arith.constant 0 : index
    %c0_33 = arith.constant 0 : index
    %c1_34 = arith.constant 1 : index
    %c0_35 = arith.constant 0 : index
    %17 = vector.load %arg1[%c0_32, %c0_33, %c1_34, %c0_35] : memref<1x16x16x4xbf16, #tpu.memory_space<vmem>>, vector<1x16x15x4xbf16>
    %18 = vector.shape_cast %17 : vector<1x16x15x4xbf16> to vector<16x15x4xbf16>
    %c0_36 = arith.constant 0 : index
    %c0_37 = arith.constant 0 : index
    %c20 = arith.constant 20 : index
    %19 = vector.load %arg6[%c0_36, %c0_37, %c20] : memref<16x16x36xbf16, #tpu.memory_space<vmem>>, vector<16x15x4xbf16>
    tpu.vector_store %arg6[%c0_36, %c0_37, %c20], %18 {strides = array<i32>} : memref<16x16x36xbf16, #tpu.memory_space<vmem>>, vector<16x15x4xbf16>,
    %c0_38 = arith.constant 0 : index
    %c1_39 = arith.constant 1 : index
    %c0_40 = arith.constant 0 : index
    %c0_41 = arith.constant 0 : index
    %20 = vector.load %arg1[%c0_38, %c1_39, %c0_40, %c0_41] : memref<1x16x16x4xbf16, #tpu.memory_space<vmem>>, vector<1x15x15x4xbf16>
    %21 = vector.shape_cast %20 : vector<1x15x15x4xbf16> to vector<15x15x4xbf16>
    %c0_42 = arith.constant 0 : index
    %c1_43 = arith.constant 1 : index
    %c24 = arith.constant 24 : index
    %22 = vector.load %arg6[%c0_42, %c1_43, %c24] : memref<16x16x36xbf16, #tpu.memory_space<vmem>>, vector<15x15x4xbf16>
    tpu.vector_store %arg6[%c0_42, %c1_43, %c24], %21 {strides = array<i32>} : memref<16x16x36xbf16, #tpu.memory_space<vmem>>, vector<15x15x4xbf16>,
    %c0_44 = arith.constant 0 : index
    %c1_45 = arith.constant 1 : index
    %c0_46 = arith.constant 0 : index
    %c0_47 = arith.constant 0 : index
    %23 = vector.load %arg1[%c0_44, %c1_45, %c0_46, %c0_47] : memref<1x16x16x4xbf16, #tpu.memory_space<vmem>>, vector<1x15x16x4xbf16>
    %24 = vector.shape_cast %23 : vector<1x15x16x4xbf16> to vector<15x16x4xbf16>
    %c0_48 = arith.constant 0 : index
    %c0_49 = arith.constant 0 : index
    %c28 = arith.constant 28 : index
    %25 = vector.load %arg6[%c0_48, %c0_49, %c28] : memref<16x16x36xbf16, #tpu.memory_space<vmem>>, vector<15x16x4xbf16>
    tpu.vector_store %arg6[%c0_48, %c0_49, %c28], %24 {strides = array<i32>} : memref<16x16x36xbf16, #tpu.memory_space<vmem>>, vector<15x16x4xbf16>,
    %c0_50 = arith.constant 0 : index
    %c1_51 = arith.constant 1 : index
    %c1_52 = arith.constant 1 : index
    %c0_53 = arith.constant 0 : index
    %26 = vector.load %arg1[%c0_50, %c1_51, %c1_52, %c0_53] : memref<1x16x16x4xbf16, #tpu.memory_space<vmem>>, vector<1x15x15x4xbf16>
    %27 = vector.shape_cast %26 : vector<1x15x15x4xbf16> to vector<15x15x4xbf16>
    %c0_54 = arith.constant 0 : index
    %c0_55 = arith.constant 0 : index
    %c32 = arith.constant 32 : index
    %28 = vector.load %arg6[%c0_54, %c0_55, %c32] : memref<16x16x36xbf16, #tpu.memory_space<vmem>>, vector<15x15x4xbf16>
    tpu.vector_store %arg6[%c0_54, %c0_55, %c32], %27 {strides = array<i32>} : memref<16x16x36xbf16, #tpu.memory_space<vmem>>, vector<15x15x4xbf16>,
    %c0_56 = arith.constant 0 : index
    %c0_57 = arith.constant 0 : index
    %c0_58 = arith.constant 0 : index
    %29 = vector.load %arg6[%c0_56, %c0_57, %c0_58] : memref<16x16x36xbf16, #tpu.memory_space<vmem>>, vector<16x16x36xbf16>
    %30 = vector.shape_cast %29 : vector<16x16x36xbf16> to vector<256x36xbf16>
    %c0_59 = arith.constant 0 : index
    %c0_60 = arith.constant 0 : index
    %31 = vector.load %arg2[%c0_59, %c0_60] : memref<8x36xbf16, #tpu.memory_space<vmem>>, vector<8x36xbf16>
    %cst_61 = arith.constant dense<0.000000e+00> : vector<8x256xf32>
    %32 = tpu.matmul %31, %30, %cst_61 {dimension_numbers = #tpu.dot_dimension_numbers<[1], [1], [0], [0], [0, 0, 1, 0], [], []>} : vector<8x36xbf16>, vector<256x36xbf16>, vector<8x256xf32> -> vector<8x256xf32>
    %c0_62 = arith.constant 0 : index
    %c0_63 = arith.constant 0 : index
    %33 = vector.load %arg3[%c0_62, %c0_63] : memref<8x1xf32, #tpu.memory_space<vmem>>, vector<8x1xf32>
    %34 = vector.broadcast %33 : vector<8x1xf32> to vector<8x256xf32>
    %35 = arith.mulf %32, %34 : vector<8x256xf32>
    %c0_64 = arith.constant 0 : index
    %c0_65 = arith.constant 0 : index
    %36 = vector.load %arg4[%c0_64, %c0_65] : memref<8x1xf32, #tpu.memory_space<vmem>>, vector<8x1xf32>
    %37 = vector.broadcast %36 : vector<8x1xf32> to vector<8x256xf32>
    %38 = arith.addf %35, %37 : vector<8x256xf32>
    %cst_66 = arith.constant 0.000000e+00 : f32
    %39 = vector.broadcast %cst_66 : f32 to vector<8x256xf32>
    %40 = arith.subf %39, %38 : vector<8x256xf32>
    %41 = math.exp %40 : vector<8x256xf32>
    %cst_67 = arith.constant 1.000000e+00 : f32
    %42 = vector.broadcast %cst_67 : f32 to vector<8x256xf32>
    %43 = arith.addf %42, %41 : vector<8x256xf32>
    %cst_68 = arith.constant 1.000000e+00 : f32
    %44 = vector.broadcast %cst_68 : f32 to vector<8x256xf32>
    %45 = arith.divf %44, %43 : vector<8x256xf32>
    %46 = arith.mulf %38, %45 : vector<8x256xf32>
    %47 = vector.shape_cast %46 : vector<8x256xf32> to vector<1x8x256xf32>
    %c0_69 = arith.constant 0 : index
    %c0_70 = arith.constant 0 : index
    %c0_71 = arith.constant 0 : index
    %48 = vector.load %arg5[%c0_69, %c0_70, %c0_71] : memref<1x8x256xf32, #tpu.memory_space<vmem>>, vector<1x8x256xf32>
    tpu.vector_store %arg5[%c0_69, %c0_70, %c0_71], %47 {strides = array<i32>} : memref<1x8x256xf32, #tpu.memory_space<vmem>>, vector<1x8x256xf32>,
    return
  }
  func.func @transform_0(%arg0: i32) -> (i32, i32, i32, i32) {
    %c0_i32 = arith.constant 0 : i32
    %c0_i32_0 = arith.constant 0 : i32
    %c0_i32_1 = arith.constant 0 : i32
    %c0_i32_2 = arith.constant 0 : i32
    return %arg0, %c0_i32, %c0_i32_0, %c0_i32_1 : i32, i32, i32, i32
  }
  func.func @transform_1(%arg0: i32) -> (i32, i32) {
    %c0_i32 = arith.constant 0 : i32
    %c0_i32_0 = arith.constant 0 : i32
    %c0_i32_1 = arith.constant 0 : i32
    return %c0_i32, %c0_i32_0 : i32, i32
  }
  func.func @transform_2(%arg0: i32) -> (i32, i32) {
    %c0_i32 = arith.constant 0 : i32
    %c0_i32_0 = arith.constant 0 : i32
    %c0_i32_1 = arith.constant 0 : i32
    return %c0_i32, %c0_i32_0 : i32, i32
  }
  func.func @transform_3(%arg0: i32) -> (i32, i32) {
    %c0_i32 = arith.constant 0 : i32
    %c0_i32_0 = arith.constant 0 : i32
    %c0_i32_1 = arith.constant 0 : i32
    return %c0_i32, %c0_i32_0 : i32, i32
  }
  func.func @transform_4(%arg0: i32) -> (i32, i32, i32) {
    %c0_i32 = arith.constant 0 : i32
    %c0_i32_0 = arith.constant 0 : i32
    %c0_i32_1 = arith.constant 0 : i32
    return %arg0, %c0_i32, %c0_i32_0 : i32, i32, i32
  }
}

</mosaic_0001>

<llo_original>
// kernel: tpu_custom_call.1
$region0: #{tpu_custom_call.1}
  #allocation0 [shape = 'u32[]', space=smem, size = 0x4, offset = 0x4, fixed_abs, tag = 'smem constant byte address 0x4 - core index']
  #allocation1 [shape = 'u32[144,128]{1,0:T(1,128)}', space=vmem, size = 0x12000, scoped, tag = 'internal scratch']
  #allocation2 [shape = 'bf16[16,16,36]{2,1,0:T(16,128)(2,1)}', space=vmem, size = 0x10000, scoped, tag = 'scratch operand']
  %s0 = inlined_call_operand.vmem [shape: bf16[2,16,16,4], index: 0, kind: input, shape index: {}]
  %s1 = inlined_call_operand.vmem [shape: bf16[8,36], index: 1, kind: input, shape index: {}]
  %s2 = inlined_call_operand.vmem [shape: f32[8,1], index: 2, kind: input, shape index: {}]
  %s3 = inlined_call_operand.vmem [shape: f32[8,1], index: 3, kind: input, shape index: {}]
  %s4 = inlined_call_operand.hbm [shape: f32[2,8,256], index: 4, kind: output, shape index: {}]
  %s5 = sld [smem:[#allocation0]]
  $region49: #{tpu_custom_call.1} parent=0
    _
  %s7 = ssub.s32 1, %s5
  %s8 = scalar_select 0, %s7, %s5
  $region1: #{tpu_custom_call.1} parent=0
    #allocation3 [shape = 'u8[16384]{0}', space=vmem, size = 0x4000, scoped, tag = 'output window, operand 0']
    #allocation4 [shape = 's32[2]{0}', space=sflag, size = 0x8, scoped, tag = 'scoped memory for tpu_custom_call.1']
    %9 = vsyncpa [#allocation4], 0
    %s10 = scalar_lea.sflag [#allocation4], 1
    %11 = vsyncpa %s10, 0
    loop: start=0, step=1, limit=4
    $region2: #{tpu_custom_call.1} parent=1 // loop_pre_header
      _
    $region3: #{tpu_custom_call.1} parent=1 // loop_header
      %s13 = sphi 0, %s17
      %p14 = scmp.ge.s32.totalorder %s13, 4
      %s23 = sphi 0, %s25
      %s26 = sphi 0, %s23
      %s27 = sphi 0, %s26
      %s43 = sphi 0, %s27
      %s47 = sphi 0, %s47
      %s49 = sphi 0, %s47
      %s50 = sphi 0, %s49
      %s64 = sphi 0, %s50
      %s68 = sphi 0, %s68
      %s70 = sphi 0, %s68
      %s71 = sphi 0, %s70
      %s85 = sphi 0, %s71
      %s89 = sphi 0, %s89
      %s91 = sphi 0, %s89
      %s92 = sphi 0, %s91
      %s106 = sphi 0, %s92
      %s112 = sphi 0, %s114
      %s115 = sphi 0, %s112
      %s116 = sphi 0, %s115
      %s132 = sphi 0, %s116
    $region4: #{tpu_custom_call.1} parent=1 // loop_header_branch
      %16 = sbr.rel (%p14) target = $region8
    $region5: #{tpu_custom_call.1} parent=1 // loop_body
      %s18 = ssub.s32 %s13, 1
      %s19 = ssub.s32 %s13, 2
      %s20 = sadd.s32 %s13, 1
      %s21 = ssub.s32 %s13, %s20
      %p22 = scmp.eq.s32.totalorder %s21, 0
      %s24 = sadd.s32 %s23, 1
      %s25 = scalar_select %p22, %s23, %s24
      %p28 = pneg %p22
      %p29 = scmp.eq.s32.totalorder %s13, 1
      %p30 = por %p28, %p29
      %p31 = scmp.ne.s32.totalorder %s23, %s26
      %p32 = scmp.eq.s32.totalorder %s13, 0
      %p33 = por %p31, %p32
      %p34 = scmp.ne.s32.totalorder %s23, %s26
      %p35 = scmp.eq.s32.totalorder %s18, 1
      %p36 = por %p34, %p35
      %p37 = scmp.ne.s32.totalorder %s26, %s27
      %p38 = scmp.eq.s32.totalorder %s18, 0
      %p39 = por %p37, %p38
      %p40 = scmp.ne.s32.totalorder %s26, %s27
      %p41 = scmp.eq.s32.totalorder %s19, 1
      %p42 = por %p40, %p41
      %p44 = scmp.ne.s32.totalorder %s27, %s43
      %p45 = scmp.eq.s32.totalorder %s19, 0
      %p46 = por %p44, %p45
      %s48 = sadd.s32 %s47, 1
      %p51 = scmp.eq.s32.totalorder %s13, 1
      %p52 = scmp.ne.s32.totalorder %s47, %s49
      %p53 = scmp.eq.s32.totalorder %s13, 0
      %p54 = por %p52, %p53
      %p55 = scmp.ne.s32.totalorder %s47, %s49
      %p56 = scmp.eq.s32.totalorder %s18, 1
      %p57 = por %p55, %p56
      %p58 = scmp.ne.s32.totalorder %s49, %s50
      %p59 = scmp.eq.s32.totalorder %s18, 0
      %p60 = por %p58, %p59
      %p61 = scmp.ne.s32.totalorder %s49, %s50
      %p62 = scmp.eq.s32.totalorder %s19, 1
      %p63 = por %p61, %p62
      %p65 = scmp.ne.s32.totalorder %s50, %s64
      %p66 = scmp.eq.s32.totalorder %s19, 0
      %p67 = por %p65, %p66
      %s69 = sadd.s32 %s68, 1
      %p72 = scmp.eq.s32.totalorder %s13, 1
      %p73 = scmp.ne.s32.totalorder %s68, %s70
      %p74 = scmp.eq.s32.totalorder %s13, 0
      %p75 = por %p73, %p74
      %p76 = scmp.ne.s32.totalorder %s68, %s70
      %p77 = scmp.eq.s32.totalorder %s18, 1
      %p78 = por %p76, %p77
      %p79 = scmp.ne.s32.totalorder %s70, %s71
      %p80 = scmp.eq.s32.totalorder %s18, 0
      %p81 = por %p79, %p80
      %p82 = scmp.ne.s32.totalorder %s70, %s71
      %p83 = scmp.eq.s32.totalorder %s19, 1
      %p84 = por %p82, %p83
      %p86 = scmp.ne.s32.totalorder %s71, %s85
      %p87 = scmp.eq.s32.totalorder %s19, 0
      %p88 = por %p86, %p87
      %s90 = sadd.s32 %s89, 1
      %p93 = scmp.eq.s32.totalorder %s13, 1
      %p94 = scmp.ne.s32.totalorder %s89, %s91
      %p95 = scmp.eq.s32.totalorder %s13, 0
      %p96 = por %p94, %p95
      %p97 = scmp.ne.s32.totalorder %s89, %s91
      %p98 = scmp.eq.s32.totalorder %s18, 1
      %p99 = por %p97, %p98
      %p100 = scmp.ne.s32.totalorder %s91, %s92
      %p101 = scmp.eq.s32.totalorder %s18, 0
      %p102 = por %p100, %p101
      %p103 = scmp.ne.s32.totalorder %s91, %s92
      %p104 = scmp.eq.s32.totalorder %s19, 1
      %p105 = por %p103, %p104
      %p107 = scmp.ne.s32.totalorder %s92, %s106
      %p108 = scmp.eq.s32.totalorder %s19, 0
      %p109 = por %p107, %p108
      %s110 = ssub.s32 %s13, %s20
      %p111 = scmp.eq.s32.totalorder %s110, 0
      %s113 = sadd.s32 %s112, 1
      %s114 = scalar_select %p111, %s112, %s113
      %p117 = pneg %p111
      %p118 = scmp.eq.s32.totalorder %s13, 1
      %p119 = por %p117, %p118
      %p120 = scmp.ne.s32.totalorder %s112, %s115
      %p121 = scmp.eq.s32.totalorder %s13, 0
      %p122 = por %p120, %p121
      %p123 = scmp.ne.s32.totalorder %s112, %s115
      %p124 = scmp.eq.s32.totalorder %s18, 1
      %p125 = por %p123, %p124
      %p126 = scmp.ne.s32.totalorder %s115, %s116
      %p127 = scmp.eq.s32.totalorder %s18, 0
      %p128 = por %p126, %p127
      %p129 = scmp.ne.s32.totalorder %s115, %s116
      %p130 = scmp.eq.s32.totalorder %s19, 1
      %p131 = por %p129, %p130
      %p133 = scmp.ne.s32.totalorder %s116, %s132
      %p134 = scmp.eq.s32.totalorder %s19, 0
      %p135 = por %p133, %p134
      %p136 = scmp.le.s32.totalorder 1, %s13
      %p137 = scmp.lt.s32.totalorder %s13, 3
      %p138 = pnand %p136, %p137
      %p139 = pneg %p138
      // Predicated region
      $region9: #{tpu_custom_call.1} parent=5 // pred_check
        _
      $region10: #{tpu_custom_call.1} parent=5 // pred_check_branch
        %141 = sbr.rel (%p138) target = $region12
      $region11: #{tpu_custom_call.1} parent=5 // pred_region
        %s142 = ssub.s32 %s13, 1
        // Predicated region
        $region13: #{tpu_custom_call.1} parent=11 // pred_check
          %p143 = pneg %p60
        $region14: #{tpu_custom_call.1} parent=11 // pred_check_branch
          %145 = sbr.rel (%p143) target = $region16
        $region15: #{tpu_custom_call.1} parent=11 // pred_region
          _
        $region16: #{tpu_custom_call.1} parent=11 // pred_fallthru
          _
        // Predicated region
        $region17: #{tpu_custom_call.1} parent=11 // pred_check
          %p146 = pneg %p81
        $region18: #{tpu_custom_call.1} parent=11 // pred_check_branch
          %148 = sbr.rel (%p146) target = $region20
        $region19: #{tpu_custom_call.1} parent=11 // pred_region
          _
        $region20: #{tpu_custom_call.1} parent=11 // pred_fallthru
          _
        // Predicated region
        $region21: #{tpu_custom_call.1} parent=11 // pred_check
          %p149 = pneg %p102
        $region22: #{tpu_custom_call.1} parent=11 // pred_check_branch
          %151 = sbr.rel (%p149) target = $region24
        $region23: #{tpu_custom_call.1} parent=11 // pred_region
          _
        $region24: #{tpu_custom_call.1} parent=11 // pred_fallthru
          _
      $region12: #{tpu_custom_call.1} parent=5 // pred_fallthru
        _
      %p152 = scmp.lt.s32.totalorder %s13, 2
      // Predicated region
      $region25: #{tpu_custom_call.1} parent=5 // pred_check
        %p153 = pneg %p152
      $region26: #{tpu_custom_call.1} parent=5 // pred_check_branch
        %155 = sbr.rel (%p153) target = $region28
      $region27: #{tpu_custom_call.1} parent=5 // pred_region
        // Predicated region
        $region29: #{tpu_custom_call.1} parent=27 // pred_check
          %p156 = pneg %p33
        $region30: #{tpu_custom_call.1} parent=27 // pred_check_branch
          %158 = sbr.rel (%p156) target = $region32
        $region31: #{tpu_custom_call.1} parent=27 // pred_region
          %p159 = scmp.lt.s32.totalorder %s13, 1
          %s160 = scalar_select %p159, %s13, 1
          %s161 = smul.addr %s160, 32
          %s162 = smul.addr %s161, 4
          %s163 = scalar_lea.vmem %s0, %s162
        $region32: #{tpu_custom_call.1} parent=27 // pred_fallthru
          _
      $region28: #{tpu_custom_call.1} parent=5 // pred_fallthru
        _
      %p164 = scmp.le.s32.totalorder 1, %s13
      %p165 = scmp.lt.s32.totalorder %s13, 3
      %p166 = pnand %p164, %p165
      %p167 = pneg %p166
      // Predicated region
      $region33: #{tpu_custom_call.1} parent=5 // pred_check
        _
      $region34: #{tpu_custom_call.1} parent=5 // pred_check_branch
        %169 = sbr.rel (%p166) target = $region36
      $region35: #{tpu_custom_call.1} parent=5 // pred_region
        %s170 = ssub.s32 %s13, 1
        %p171 = scmp.lt.s32.totalorder %s18, 1
        %s172 = scalar_select %p171, %s18, 1
        %s173 = smul.addr %s172, 32
        %s174 = smul.addr %s173, 4
        %s175 = scalar_lea.vmem %s0, %s174
        %p176 = pneg %p39
        %p177 = pneg %p36
        %p178 = pneg %p60
        %p179 = pneg %p57
        %p180 = pneg %p81
        %p181 = pneg %p78
        %p182 = pneg %p102
        %p183 = pneg %p99
        %p184 = pneg %p128
        %p185 = pneg %p125
        %s186 = sand.u32 %s115, 1
        %s187 = scalar_lea.sflag [#allocation4], %s186
        %s188 = sand.u32 %s115, 1
        %s189 = smul.addr %s188, 16
        %s190 = scalar_lea.vmem [#allocation3], %s189
        %p191 = scmp.lt.s32.totalorder %s18, 1
        %s192 = scalar_select %p191, %s18, 1
        %s193 = smul.addr %s192, 32
        %s194 = smul.addr %s193, 4
        %s195 = scalar_lea.vmem %s0, %s194
        %vm197 = vcmask 293888
        %198 = vst.msk [vmem:[#allocation2] sm:$0xff] %vm197, 0
        %199 = vst.msk [vmem:[#allocation2 + $0x8] sm:$0xff] %vm197, 0
        %200 = vst.msk [vmem:[#allocation2 + $0x10] sm:$0xff] %vm197, 0
        %201 = vst.msk [vmem:[#allocation2 + $0x18] sm:$0xff] %vm197, 0
        %202 = vst.msk [vmem:[#allocation2 + $0x20] sm:$0xff] %vm197, 0
        %203 = vst.msk [vmem:[#allocation2 + $0x28] sm:$0xff] %vm197, 0
        %204 = vst.msk [vmem:[#allocation2 + $0x30] sm:$0xff] %vm197, 0
        %205 = vst.msk [vmem:[#allocation2 + $0x38] sm:$0xff] %vm197, 0
        %206 = vst.msk [vmem:[#allocation2 + $0x40] sm:$0xff] %vm197, 0
        %207 = vst.msk [vmem:[#allocation2 + $0x48] sm:$0xff] %vm197, 0
        %208 = vst.msk [vmem:[#allocation2 + $0x50] sm:$0xff] %vm197, 0
        %209 = vst.msk [vmem:[#allocation2 + $0x58] sm:$0xff] %vm197, 0
        %210 = vst.msk [vmem:[#allocation2 + $0x60] sm:$0xff] %vm197, 0
        %211 = vst.msk [vmem:[#allocation2 + $0x68] sm:$0xff] %vm197, 0
        %212 = vst.msk [vmem:[#allocation2 + $0x70] sm:$0xff] %vm197, 0
        %213 = vst.msk [vmem:[#allocation2 + $0x78] sm:$0xff] %vm197, 0
        %v214 = vld [vmem:[%s195] sm:$0xf]
        %v215 = vld [vmem:[%s195 + $0x4] sm:$0xf]
        %v216 = vld [vmem:[%s195 + $0x8] sm:$0xf]
        %v217 = vld [vmem:[%s195 + $0xc] sm:$0xf]
        %v218 = vld [vmem:[%s195 + $0x10] sm:$0xf]
        %v219 = vld [vmem:[%s195 + $0x14] sm:$0xf]
        %v220 = vld [vmem:[%s195 + $0x18] sm:$0xf]
        %v221 = vld [vmem:[%s195 + $0x1c] sm:$0xf]
        %v222 = vld [vmem:[%s195 + $0x20] sm:$0xf]
        %v223 = vld [vmem:[%s195 + $0x24] sm:$0xf]
        %v224 = vld [vmem:[%s195 + $0x28] sm:$0xf]
        %v225 = vld [vmem:[%s195 + $0x2c] sm:$0xf]
        %v226 = vld [vmem:[%s195 + $0x30] sm:$0xf]
        %v227 = vld [vmem:[%s195 + $0x34] sm:$0xf]
        %v228 = vld [vmem:[%s195 + $0x38] sm:$0xf]
        %v229 = vld [vmem:[%s195 + $0x3c] sm:$0xf]
        %v230 = vld [vmem:[%s195 + $0x40] sm:$0xf]
        %v231 = vld [vmem:[%s195 + $0x44] sm:$0xf]
        %v232 = vld [vmem:[%s195 + $0x48] sm:$0xf]
        %v233 = vld [vmem:[%s195 + $0x4c] sm:$0xf]
        %v234 = vld [vmem:[%s195 + $0x50] sm:$0xf]
        %v235 = vld [vmem:[%s195 + $0x54] sm:$0xf]
        %v236 = vld [vmem:[%s195 + $0x58] sm:$0xf]
        %v237 = vld [vmem:[%s195 + $0x5c] sm:$0xf]
        %v238 = vld [vmem:[%s195 + $0x60] sm:$0xf]
        %v239 = vld [vmem:[%s195 + $0x64] sm:$0xf]
        %v240 = vld [vmem:[%s195 + $0x68] sm:$0xf]
        %v241 = vld [vmem:[%s195 + $0x6c] sm:$0xf]
        %v242 = vld [vmem:[%s195 + $0x70] sm:$0xf]
        %v243 = vld [vmem:[%s195 + $0x74] sm:$0xf]
        %v274 = vunpack.c.l.b16 %v214
        %v275 = vunpack.c.l.b16 %v215
        %v276 = vunpack.c.l.b16 %v216
        %v277 = vunpack.c.l.b16 %v217
        %v278 = vunpack.c.l.b16 %v218
        %v279 = vunpack.c.l.b16 %v219
        %v280 = vunpack.c.l.b16 %v220
        %v281 = vunpack.c.l.b16 %v221
        %v282 = vunpack.c.l.b16 %v222
        %v283 = vunpack.c.l.b16 %v223
        %v284 = vunpack.c.l.b16 %v224
        %v285 = vunpack.c.l.b16 %v225
        %v286 = vunpack.c.l.b16 %v226
        %v287 = vunpack.c.l.b16 %v227
        %v288 = vunpack.c.l.b16 %v228
        %v289 = vunpack.c.l.b16 %v229
        %v290 = vunpack.c.l.b16 %v230
        %v291 = vunpack.c.l.b16 %v231
        %v292 = vunpack.c.l.b16 %v232
        %v293 = vunpack.c.l.b16 %v233
        %v294 = vunpack.c.l.b16 %v234
        %v295 = vunpack.c.l.b16 %v235
        %v296 = vunpack.c.l.b16 %v236
        %v297 = vunpack.c.l.b16 %v237
        %v298 = vunpack.c.l.b16 %v238
        %v299 = vunpack.c.l.b16 %v239
        %v300 = vunpack.c.l.b16 %v240
        %v301 = vunpack.c.l.b16 %v241
        %v302 = vunpack.c.l.b16 %v242
        %v303 = vunpack.c.l.b16 %v243
        %v304 = vpack.c.b16 %v275, %v274
        %v305 = vpack.c.b16 %v277, %v276
        %v306 = vpack.c.b16 %v279, %v278
        %v307 = vpack.c.b16 %v281, %v280
        %v308 = vpack.c.b16 %v283, %v282
        %v309 = vpack.c.b16 %v285, %v284
        %v310 = vpack.c.b16 %v287, %v286
        %v311 = vpack.c.b16 %v289, %v288
        %v312 = vpack.c.b16 %v291, %v290
        %v313 = vpack.c.b16 %v293, %v292
        %v314 = vpack.c.b16 %v295, %v294
        %v315 = vpack.c.b16 %v297, %v296
        %v316 = vpack.c.b16 %v299, %v298
        %v317 = vpack.c.b16 %v301, %v300
        %v318 = vpack.c.b16 %v303, %v302
        %v320 = vshrl.u32 %v304, 16
        %v322 = vrot.slane %v320, 7
        %v323 = vshll.u32 %v304, 16
        %v325 = vor.u32 %v322, %v323
        %v327 = vshrl.u32 %v305, 16
        %v329 = vrot.slane %v327, 7
        %v330 = vshll.u32 %v305, 16
        %v332 = vor.u32 %v329, %v330
        %v334 = vshrl.u32 %v306, 16
        %v336 = vrot.slane %v334, 7
        %v337 = vshll.u32 %v306, 16
        %v339 = vor.u32 %v336, %v337
        %v341 = vshrl.u32 %v307, 16
        %v343 = vrot.slane %v341, 7
        %v344 = vshll.u32 %v307, 16
        %v346 = vor.u32 %v343, %v344
        %v348 = vshrl.u32 %v308, 16
        %v350 = vrot.slane %v348, 7
        %v351 = vshll.u32 %v308, 16
        %v353 = vor.u32 %v350, %v351
        %v355 = vshrl.u32 %v309, 16
        %v357 = vrot.slane %v355, 7
        %v358 = vshll.u32 %v309, 16
        %v360 = vor.u32 %v357, %v358
        %v362 = vshrl.u32 %v310, 16
        %v364 = vrot.slane %v362, 7
        %v365 = vshll.u32 %v310, 16
        %v367 = vor.u32 %v364, %v365
        %v369 = vshrl.u32 %v311, 16
        %v371 = vrot.slane %v369, 7
        %v372 = vshll.u32 %v311, 16
        %v374 = vor.u32 %v371, %v372
        %v376 = vshrl.u32 %v312, 16
        %v378 = vrot.slane %v376, 7
        %v379 = vshll.u32 %v312, 16
        %v381 = vor.u32 %v378, %v379
        %v383 = vshrl.u32 %v313, 16
        %v385 = vrot.slane %v383, 7
        %v386 = vshll.u32 %v313, 16
        %v388 = vor.u32 %v385, %v386
        %v390 = vshrl.u32 %v314, 16
        %v392 = vrot.slane %v390, 7
        %v393 = vshll.u32 %v314, 16
        %v395 = vor.u32 %v392, %v393
        %v397 = vshrl.u32 %v315, 16
        %v399 = vrot.slane %v397, 7
        %v400 = vshll.u32 %v315, 16
        %v402 = vor.u32 %v399, %v400
        %v404 = vshrl.u32 %v316, 16
        %v406 = vrot.slane %v404, 7
        %v407 = vshll.u32 %v316, 16
        %v409 = vor.u32 %v406, %v407
        %v411 = vshrl.u32 %v317, 16
        %v413 = vrot.slane %v411, 7
        %v414 = vshll.u32 %v317, 16
        %v416 = vor.u32 %v413, %v414
        %v418 = vshrl.u32 %v318, 16
        %v420 = vrot.slane %v418, 7
        %v421 = vshll.u32 %v318, 16
        %v423 = vor.u32 %v420, %v421
        %s439 = scalar_lea.vmem [#allocation2], 8
        %vm440 = vcmask 31744
        %vm441 = vsmask.f32 7938
        %vm442 = vmand %vm440, %vm441
        %v443 = vld [vmem:[%s439] sm:$0xff]
        %v444 = vsel %vm442, %v325, %v443
        %445 = vst [vmem:[%s439] sm:$0xff] %v444
        %v446 = vld [vmem:[%s439 + $0x8] sm:$0xff]
        %v447 = vsel %vm442, %v332, %v446
        %448 = vst [vmem:[%s439 + $0x8] sm:$0xff] %v447
        %v449 = vld [vmem:[%s439 + $0x10] sm:$0xff]
        %v450 = vsel %vm442, %v339, %v449
        %451 = vst [vmem:[%s439 + $0x10] sm:$0xff] %v450
        %v452 = vld [vmem:[%s439 + $0x18] sm:$0xff]
        %v453 = vsel %vm442, %v346, %v452
        %454 = vst [vmem:[%s439 + $0x18] sm:$0xff] %v453
        %v455 = vld [vmem:[%s439 + $0x20] sm:$0xff]
        %v456 = vsel %vm442, %v353, %v455
        %457 = vst [vmem:[%s439 + $0x20] sm:$0xff] %v456
        %v458 = vld [vmem:[%s439 + $0x28] sm:$0xff]
        %v459 = vsel %vm442, %v360, %v458
        %460 = vst [vmem:[%s439 + $0x28] sm:$0xff] %v459
        %v461 = vld [vmem:[%s439 + $0x30] sm:$0xff]
        %v462 = vsel %vm442, %v367, %v461
        %463 = vst [vmem:[%s439 + $0x30] sm:$0xff] %v462
        %v464 = vld [vmem:[%s439 + $0x38] sm:$0xff]
        %v465 = vsel %vm442, %v374, %v464
        %466 = vst [vmem:[%s439 + $0x38] sm:$0xff] %v465
        %v467 = vld [vmem:[%s439 + $0x40] sm:$0xff]
        %v468 = vsel %vm442, %v381, %v467
        %469 = vst [vmem:[%s439 + $0x40] sm:$0xff] %v468
        %v470 = vld [vmem:[%s439 + $0x48] sm:$0xff]
        %v471 = vsel %vm442, %v388, %v470
        %472 = vst [vmem:[%s439 + $0x48] sm:$0xff] %v471
        %v473 = vld [vmem:[%s439 + $0x50] sm:$0xff]
        %v474 = vsel %vm442, %v395, %v473
        %475 = vst [vmem:[%s439 + $0x50] sm:$0xff] %v474
        %v476 = vld [vmem:[%s439 + $0x58] sm:$0xff]
        %v477 = vsel %vm442, %v402, %v476
        %478 = vst [vmem:[%s439 + $0x58] sm:$0xff] %v477
        %v479 = vld [vmem:[%s439 + $0x60] sm:$0xff]
        %v480 = vsel %vm442, %v409, %v479
        %481 = vst [vmem:[%s439 + $0x60] sm:$0xff] %v480
        %v482 = vld [vmem:[%s439 + $0x68] sm:$0xff]
        %v483 = vsel %vm442, %v416, %v482
        %484 = vst [vmem:[%s439 + $0x68] sm:$0xff] %v483
        %v485 = vld [vmem:[%s439 + $0x70] sm:$0xff]
        %v486 = vsel %vm442, %v423, %v485
        %487 = vst [vmem:[%s439 + $0x70] sm:$0xff] %v486
        %v488 = vld [vmem:[%s195] sm:$0xf]
        %v489 = vld [vmem:[%s195 + $0x4] sm:$0xf]
        %v490 = vld [vmem:[%s195 + $0x8] sm:$0xf]
        %v491 = vld [vmem:[%s195 + $0xc] sm:$0xf]
        %v492 = vld [vmem:[%s195 + $0x10] sm:$0xf]
        %v493 = vld [vmem:[%s195 + $0x14] sm:$0xf]
        %v494 = vld [vmem:[%s195 + $0x18] sm:$0xf]
        %v495 = vld [vmem:[%s195 + $0x1c] sm:$0xf]
        %v496 = vld [vmem:[%s195 + $0x20] sm:$0xf]
        %v497 = vld [vmem:[%s195 + $0x24] sm:$0xf]
        %v498 = vld [vmem:[%s195 + $0x28] sm:$0xf]
        %v499 = vld [vmem:[%s195 + $0x2c] sm:$0xf]
        %v500 = vld [vmem:[%s195 + $0x30] sm:$0xf]
        %v501 = vld [vmem:[%s195 + $0x34] sm:$0xf]
        %v502 = vld [vmem:[%s195 + $0x38] sm:$0xf]
        %v503 = vld [vmem:[%s195 + $0x3c] sm:$0xf]
        %v504 = vld [vmem:[%s195 + $0x40] sm:$0xf]
        %v505 = vld [vmem:[%s195 + $0x44] sm:$0xf]
        %v506 = vld [vmem:[%s195 + $0x48] sm:$0xf]
        %v507 = vld [vmem:[%s195 + $0x4c] sm:$0xf]
        %v508 = vld [vmem:[%s195 + $0x50] sm:$0xf]
        %v509 = vld [vmem:[%s195 + $0x54] sm:$0xf]
        %v510 = vld [vmem:[%s195 + $0x58] sm:$0xf]
        %v511 = vld [vmem:[%s195 + $0x5c] sm:$0xf]
        %v512 = vld [vmem:[%s195 + $0x60] sm:$0xf]
        %v513 = vld [vmem:[%s195 + $0x64] sm:$0xf]
        %v514 = vld [vmem:[%s195 + $0x68] sm:$0xf]
        %v515 = vld [vmem:[%s195 + $0x6c] sm:$0xf]
        %v516 = vld [vmem:[%s195 + $0x70] sm:$0xf]
        %v517 = vld [vmem:[%s195 + $0x74] sm:$0xf]
        %v548 = vunpack.c.l.b16 %v488
        %v549 = vunpack.c.l.b16 %v489
        %v550 = vunpack.c.l.b16 %v490
        %v551 = vunpack.c.l.b16 %v491
        %v552 = vunpack.c.l.b16 %v492
        %v553 = vunpack.c.l.b16 %v493
        %v554 = vunpack.c.l.b16 %v494
        %v555 = vunpack.c.l.b16 %v495
        %v556 = vunpack.c.l.b16 %v496
        %v557 = vunpack.c.l.b16 %v497
        %v558 = vunpack.c.l.b16 %v498
        %v559 = vunpack.c.l.b16 %v499
        %v560 = vunpack.c.l.b16 %v500
        %v561 = vunpack.c.l.b16 %v501
        %v562 = vunpack.c.l.b16 %v502
        %v563 = vunpack.c.l.b16 %v503
        %v564 = vunpack.c.l.b16 %v504
        %v565 = vunpack.c.l.b16 %v505
        %v566 = vunpack.c.l.b16 %v506
        %v567 = vunpack.c.l.b16 %v507
        %v568 = vunpack.c.l.b16 %v508
        %v569 = vunpack.c.l.b16 %v509
        %v570 = vunpack.c.l.b16 %v510
        %v571 = vunpack.c.l.b16 %v511
        %v572 = vunpack.c.l.b16 %v512
        %v573 = vunpack.c.l.b16 %v513
        %v574 = vunpack.c.l.b16 %v514
        %v575 = vunpack.c.l.b16 %v515
        %v576 = vunpack.c.l.b16 %v516
        %v577 = vunpack.c.l.b16 %v517
        %v578 = vpack.c.b16 %v549, %v548
        %v579 = vpack.c.b16 %v551, %v550
        %v580 = vpack.c.b16 %v553, %v552
        %v581 = vpack.c.b16 %v555, %v554
        %v582 = vpack.c.b16 %v557, %v556
        %v583 = vpack.c.b16 %v559, %v558
        %v584 = vpack.c.b16 %v561, %v560
        %v585 = vpack.c.b16 %v563, %v562
        %v586 = vpack.c.b16 %v565, %v564
        %v587 = vpack.c.b16 %v567, %v566
        %v588 = vpack.c.b16 %v569, %v568
        %v589 = vpack.c.b16 %v571, %v570
        %v590 = vpack.c.b16 %v573, %v572
        %v591 = vpack.c.b16 %v575, %v574
        %v592 = vpack.c.b16 %v577, %v576
        %593 = vrot.lane.b32.xlu0 %v578, 4
        %v594 = vpop.permute.xlu0 %593
        %595 = vrot.lane.b32.xlu0 %v579, 4
        %v596 = vpop.permute.xlu0 %595
        %597 = vrot.lane.b32.xlu0 %v580, 4
        %v598 = vpop.permute.xlu0 %597
        %599 = vrot.lane.b32.xlu0 %v581, 4
        %v600 = vpop.permute.xlu0 %599
        %601 = vrot.lane.b32.xlu0 %v582, 4
        %v602 = vpop.permute.xlu0 %601
        %603 = vrot.lane.b32.xlu0 %v583, 4
        %v604 = vpop.permute.xlu0 %603
        %605 = vrot.lane.b32.xlu0 %v584, 4
        %v606 = vpop.permute.xlu0 %605
        %607 = vrot.lane.b32.xlu0 %v585, 4
        %v608 = vpop.permute.xlu0 %607
        %609 = vrot.lane.b32.xlu0 %v586, 4
        %v610 = vpop.permute.xlu0 %609
        %611 = vrot.lane.b32.xlu0 %v587, 4
        %v612 = vpop.permute.xlu0 %611
        %613 = vrot.lane.b32.xlu0 %v588, 4
        %v614 = vpop.permute.xlu0 %613
        %615 = vrot.lane.b32.xlu0 %v589, 4
        %v616 = vpop.permute.xlu0 %615
        %617 = vrot.lane.b32.xlu0 %v590, 4
        %v618 = vpop.permute.xlu0 %617
        %619 = vrot.lane.b32.xlu0 %v591, 4
        %v620 = vpop.permute.xlu0 %619
        %621 = vrot.lane.b32.xlu0 %v592, 4
        %v622 = vpop.permute.xlu0 %621
        %vm638 = vcmask 64544
        %639 = vst.msk [vmem:[%s439] sm:$0xff] %vm638, %v594
        %640 = vst.msk [vmem:[%s439 + $0x8] sm:$0xff] %vm638, %v596
        %641 = vst.msk [vmem:[%s439 + $0x10] sm:$0xff] %vm638, %v598
        %642 = vst.msk [vmem:[%s439 + $0x18] sm:$0xff] %vm638, %v600
        %643 = vst.msk [vmem:[%s439 + $0x20] sm:$0xff] %vm638, %v602
        %644 = vst.msk [vmem:[%s439 + $0x28] sm:$0xff] %vm638, %v604
        %645 = vst.msk [vmem:[%s439 + $0x30] sm:$0xff] %vm638, %v606
        %646 = vst.msk [vmem:[%s439 + $0x38] sm:$0xff] %vm638, %v608
        %647 = vst.msk [vmem:[%s439 + $0x40] sm:$0xff] %vm638, %v610
        %648 = vst.msk [vmem:[%s439 + $0x48] sm:$0xff] %vm638, %v612
        %649 = vst.msk [vmem:[%s439 + $0x50] sm:$0xff] %vm638, %v614
        %650 = vst.msk [vmem:[%s439 + $0x58] sm:$0xff] %vm638, %v616
        %651 = vst.msk [vmem:[%s439 + $0x60] sm:$0xff] %vm638, %v618
        %652 = vst.msk [vmem:[%s439 + $0x68] sm:$0xff] %vm638, %v620
        %653 = vst.msk [vmem:[%s439 + $0x70] sm:$0xff] %vm638, %v622
        %v654 = vld [vmem:[%s195] sm:$0xf]
        %v655 = vld [vmem:[%s195 + $0x4] sm:$0xf]
        %v656 = vld [vmem:[%s195 + $0x8] sm:$0xf]
        %v657 = vld [vmem:[%s195 + $0xc] sm:$0xf]
        %v658 = vld [vmem:[%s195 + $0x10] sm:$0xf]
        %v659 = vld [vmem:[%s195 + $0x14] sm:$0xf]
        %v660 = vld [vmem:[%s195 + $0x18] sm:$0xf]
        %v661 = vld [vmem:[%s195 + $0x1c] sm:$0xf]
        %v662 = vld [vmem:[%s195 + $0x20] sm:$0xf]
        %v663 = vld [vmem:[%s195 + $0x24] sm:$0xf]
        %v664 = vld [vmem:[%s195 + $0x28] sm:$0xf]
        %v665 = vld [vmem:[%s195 + $0x2c] sm:$0xf]
        %v666 = vld [vmem:[%s195 + $0x30] sm:$0xf]
        %v667 = vld [vmem:[%s195 + $0x34] sm:$0xf]
        %v668 = vld [vmem:[%s195 + $0x38] sm:$0xf]
        %v669 = vld [vmem:[%s195 + $0x3c] sm:$0xf]
        %v670 = vld [vmem:[%s195 + $0x40] sm:$0xf]
        %v671 = vld [vmem:[%s195 + $0x44] sm:$0xf]
        %v672 = vld [vmem:[%s195 + $0x48] sm:$0xf]
        %v673 = vld [vmem:[%s195 + $0x4c] sm:$0xf]
        %v674 = vld [vmem:[%s195 + $0x50] sm:$0xf]
        %v675 = vld [vmem:[%s195 + $0x54] sm:$0xf]
        %v676 = vld [vmem:[%s195 + $0x58] sm:$0xf]
        %v677 = vld [vmem:[%s195 + $0x5c] sm:$0xf]
        %v678 = vld [vmem:[%s195 + $0x60] sm:$0xf]
        %v679 = vld [vmem:[%s195 + $0x64] sm:$0xf]
        %v680 = vld [vmem:[%s195 + $0x68] sm:$0xf]
        %v681 = vld [vmem:[%s195 + $0x6c] sm:$0xf]
        %v682 = vld [vmem:[%s195 + $0x70] sm:$0xf]
        %v683 = vld [vmem:[%s195 + $0x74] sm:$0xf]
        %v714 = vunpack.c.l.b16 %v654
        %v715 = vunpack.c.l.b16 %v655
        %v716 = vunpack.c.l.b16 %v656
        %v717 = vunpack.c.l.b16 %v657
        %v718 = vunpack.c.l.b16 %v658
        %v719 = vunpack.c.l.b16 %v659
        %v720 = vunpack.c.l.b16 %v660
        %v721 = vunpack.c.l.b16 %v661
        %v722 = vunpack.c.l.b16 %v662
        %v723 = vunpack.c.l.b16 %v663
        %v724 = vunpack.c.l.b16 %v664
        %v725 = vunpack.c.l.b16 %v665
        %v726 = vunpack.c.l.b16 %v666
        %v727 = vunpack.c.l.b16 %v667
        %v728 = vunpack.c.l.b16 %v668
        %v729 = vunpack.c.l.b16 %v669
        %v730 = vunpack.c.l.b16 %v670
        %v731 = vunpack.c.l.b16 %v671
        %v732 = vunpack.c.l.b16 %v672
        %v733 = vunpack.c.l.b16 %v673
        %v734 = vunpack.c.l.b16 %v674
        %v735 = vunpack.c.l.b16 %v675
        %v736 = vunpack.c.l.b16 %v676
        %v737 = vunpack.c.l.b16 %v677
        %v738 = vunpack.c.l.b16 %v678
        %v739 = vunpack.c.l.b16 %v679
        %v740 = vunpack.c.l.b16 %v680
        %v741 = vunpack.c.l.b16 %v681
        %v742 = vunpack.c.l.b16 %v682
        %v743 = vunpack.c.l.b16 %v683
        %v744 = vpack.c.b16 %v715, %v714
        %v745 = vpack.c.b16 %v717, %v716
        %v746 = vpack.c.b16 %v719, %v718
        %v747 = vpack.c.b16 %v721, %v720
        %v748 = vpack.c.b16 %v723, %v722
        %v749 = vpack.c.b16 %v725, %v724
        %v750 = vpack.c.b16 %v727, %v726
        %v751 = vpack.c.b16 %v729, %v728
        %v752 = vpack.c.b16 %v731, %v730
        %v753 = vpack.c.b16 %v733, %v732
        %v754 = vpack.c.b16 %v735, %v734
        %v755 = vpack.c.b16 %v737, %v736
        %v756 = vpack.c.b16 %v739, %v738
        %v757 = vpack.c.b16 %v741, %v740
        %v758 = vpack.c.b16 %v743, %v742
        %v760 = vshrl.u32 %v744, 16
        %v762 = vshll.u32 %v744, 16
        %v764 = vrot.slane %v762, 1
        %v765 = vor.u32 %v760, %v764
        %v767 = vshrl.u32 %v745, 16
        %v769 = vshll.u32 %v745, 16
        %v771 = vrot.slane %v769, 1
        %v772 = vor.u32 %v767, %v771
        %v774 = vshrl.u32 %v746, 16
        %v776 = vshll.u32 %v746, 16
        %v778 = vrot.slane %v776, 1
        %v779 = vor.u32 %v774, %v778
        %v781 = vshrl.u32 %v747, 16
        %v783 = vshll.u32 %v747, 16
        %v785 = vrot.slane %v783, 1
        %v786 = vor.u32 %v781, %v785
        %v788 = vshrl.u32 %v748, 16
        %v790 = vshll.u32 %v748, 16
        %v792 = vrot.slane %v790, 1
        %v793 = vor.u32 %v788, %v792
        %v795 = vshrl.u32 %v749, 16
        %v797 = vshll.u32 %v749, 16
        %v799 = vrot.slane %v797, 1
        %v800 = vor.u32 %v795, %v799
        %v802 = vshrl.u32 %v750, 16
        %v804 = vshll.u32 %v750, 16
        %v806 = vrot.slane %v804, 1
        %v807 = vor.u32 %v802, %v806
        %v809 = vshrl.u32 %v751, 16
        %v811 = vshll.u32 %v751, 16
        %v813 = vrot.slane %v811, 1
        %v814 = vor.u32 %v809, %v813
        %v816 = vshrl.u32 %v752, 16
        %v818 = vshll.u32 %v752, 16
        %v820 = vrot.slane %v818, 1
        %v821 = vor.u32 %v816, %v820
        %v823 = vshrl.u32 %v753, 16
        %v825 = vshll.u32 %v753, 16
        %v827 = vrot.slane %v825, 1
        %v828 = vor.u32 %v823, %v827
        %v830 = vshrl.u32 %v754, 16
        %v832 = vshll.u32 %v754, 16
        %v834 = vrot.slane %v832, 1
        %v835 = vor.u32 %v830, %v834
        %v837 = vshrl.u32 %v755, 16
        %v839 = vshll.u32 %v755, 16
        %v841 = vrot.slane %v839, 1
        %v842 = vor.u32 %v837, %v841
        %v844 = vshrl.u32 %v756, 16
        %v846 = vshll.u32 %v756, 16
        %v848 = vrot.slane %v846, 1
        %v849 = vor.u32 %v844, %v848
        %v851 = vshrl.u32 %v757, 16
        %v853 = vshll.u32 %v757, 16
        %v855 = vrot.slane %v853, 1
        %v856 = vor.u32 %v851, %v855
        %v858 = vshrl.u32 %v758, 16
        %v860 = vshll.u32 %v758, 16
        %v862 = vrot.slane %v860, 1
        %v863 = vor.u32 %v858, %v862
        %864 = vrot.lane.b32.xlu0 %v765, 8
        %v865 = vpop.permute.xlu0 %864
        %866 = vrot.lane.b32.xlu0 %v772, 8
        %v867 = vpop.permute.xlu0 %866
        %868 = vrot.lane.b32.xlu0 %v779, 8
        %v869 = vpop.permute.xlu0 %868
        %870 = vrot.lane.b32.xlu0 %v786, 8
        %v871 = vpop.permute.xlu0 %870
        %872 = vrot.lane.b32.xlu0 %v793, 8
        %v873 = vpop.permute.xlu0 %872
        %874 = vrot.lane.b32.xlu0 %v800, 8
        %v875 = vpop.permute.xlu0 %874
        %876 = vrot.lane.b32.xlu0 %v807, 8
        %v877 = vpop.permute.xlu0 %876
        %878 = vrot.lane.b32.xlu0 %v814, 8
        %v879 = vpop.permute.xlu0 %878
        %880 = vrot.lane.b32.xlu0 %v821, 8
        %v881 = vpop.permute.xlu0 %880
        %882 = vrot.lane.b32.xlu0 %v828, 8
        %v883 = vpop.permute.xlu0 %882
        %884 = vrot.lane.b32.xlu0 %v835, 8
        %v885 = vpop.permute.xlu0 %884
        %886 = vrot.lane.b32.xlu0 %v842, 8
        %v887 = vpop.permute.xlu0 %886
        %888 = vrot.lane.b32.xlu0 %v849, 8
        %v889 = vpop.permute.xlu0 %888
        %890 = vrot.lane.b32.xlu0 %v856, 8
        %v891 = vpop.permute.xlu0 %890
        %892 = vrot.lane.b32.xlu0 %v863, 8
        %v893 = vpop.permute.xlu0 %892
        %vm909 = vcmask 97344
        %vm910 = vsmask.f32 7424
        %vm911 = vmand %vm909, %vm910
        %v912 = vld [vmem:[%s439] sm:$0xff]
        %v913 = vsel %vm911, %v865, %v912
        %914 = vst [vmem:[%s439] sm:$0xff] %v913
        %v915 = vld [vmem:[%s439 + $0x8] sm:$0xff]
        %v916 = vsel %vm911, %v867, %v915
        %917 = vst [vmem:[%s439 + $0x8] sm:$0xff] %v916
        %v918 = vld [vmem:[%s439 + $0x10] sm:$0xff]
        %v919 = vsel %vm911, %v869, %v918
        %920 = vst [vmem:[%s439 + $0x10] sm:$0xff] %v919
        %v921 = vld [vmem:[%s439 + $0x18] sm:$0xff]
        %v922 = vsel %vm911, %v871, %v921
        %923 = vst [vmem:[%s439 + $0x18] sm:$0xff] %v922
        %v924 = vld [vmem:[%s439 + $0x20] sm:$0xff]
        %v925 = vsel %vm911, %v873, %v924
        %926 = vst [vmem:[%s439 + $0x20] sm:$0xff] %v925
        %v927 = vld [vmem:[%s439 + $0x28] sm:$0xff]
        %v928 = vsel %vm911, %v875, %v927
        %929 = vst [vmem:[%s439 + $0x28] sm:$0xff] %v928
        %v930 = vld [vmem:[%s439 + $0x30] sm:$0xff]
        %v931 = vsel %vm911, %v877, %v930
        %932 = vst [vmem:[%s439 + $0x30] sm:$0xff] %v931
        %v933 = vld [vmem:[%s439 + $0x38] sm:$0xff]
        %v934 = vsel %vm911, %v879, %v933
        %935 = vst [vmem:[%s439 + $0x38] sm:$0xff] %v934
        %v936 = vld [vmem:[%s439 + $0x40] sm:$0xff]
        %v937 = vsel %vm911, %v881, %v936
        %938 = vst [vmem:[%s439 + $0x40] sm:$0xff] %v937
        %v939 = vld [vmem:[%s439 + $0x48] sm:$0xff]
        %v940 = vsel %vm911, %v883, %v939
        %941 = vst [vmem:[%s439 + $0x48] sm:$0xff] %v940
        %v942 = vld [vmem:[%s439 + $0x50] sm:$0xff]
        %v943 = vsel %vm911, %v885, %v942
        %944 = vst [vmem:[%s439 + $0x50] sm:$0xff] %v943
        %v945 = vld [vmem:[%s439 + $0x58] sm:$0xff]
        %v946 = vsel %vm911, %v887, %v945
        %947 = vst [vmem:[%s439 + $0x58] sm:$0xff] %v946
        %v948 = vld [vmem:[%s439 + $0x60] sm:$0xff]
        %v949 = vsel %vm911, %v889, %v948
        %950 = vst [vmem:[%s439 + $0x60] sm:$0xff] %v949
        %v951 = vld [vmem:[%s439 + $0x68] sm:$0xff]
        %v952 = vsel %vm911, %v891, %v951
        %953 = vst [vmem:[%s439 + $0x68] sm:$0xff] %v952
        %v954 = vld [vmem:[%s439 + $0x70] sm:$0xff]
        %v955 = vsel %vm911, %v893, %v954
        %956 = vst [vmem:[%s439 + $0x70] sm:$0xff] %v955
        %v957 = vld [vmem:[%s195] sm:$0xf]
        %v958 = vld [vmem:[%s195 + $0x4] sm:$0xf]
        %v959 = vld [vmem:[%s195 + $0x8] sm:$0xf]
        %v960 = vld [vmem:[%s195 + $0xc] sm:$0xf]
        %v961 = vld [vmem:[%s195 + $0x10] sm:$0xf]
        %v962 = vld [vmem:[%s195 + $0x14] sm:$0xf]
        %v963 = vld [vmem:[%s195 + $0x18] sm:$0xf]
        %v964 = vld [vmem:[%s195 + $0x1c] sm:$0xf]
        %v965 = vld [vmem:[%s195 + $0x20] sm:$0xf]
        %v966 = vld [vmem:[%s195 + $0x24] sm:$0xf]
        %v967 = vld [vmem:[%s195 + $0x28] sm:$0xf]
        %v968 = vld [vmem:[%s195 + $0x2c] sm:$0xf]
        %v969 = vld [vmem:[%s195 + $0x30] sm:$0xf]
        %v970 = vld [vmem:[%s195 + $0x34] sm:$0xf]
        %v971 = vld [vmem:[%s195 + $0x38] sm:$0xf]
        %v972 = vld [vmem:[%s195 + $0x3c] sm:$0xf]
        %v973 = vld [vmem:[%s195 + $0x40] sm:$0xf]
        %v974 = vld [vmem:[%s195 + $0x44] sm:$0xf]
        %v975 = vld [vmem:[%s195 + $0x48] sm:$0xf]
        %v976 = vld [vmem:[%s195 + $0x4c] sm:$0xf]
        %v977 = vld [vmem:[%s195 + $0x50] sm:$0xf]
        %v978 = vld [vmem:[%s195 + $0x54] sm:$0xf]
        %v979 = vld [vmem:[%s195 + $0x58] sm:$0xf]
        %v980 = vld [vmem:[%s195 + $0x5c] sm:$0xf]
        %v981 = vld [vmem:[%s195 + $0x60] sm:$0xf]
        %v982 = vld [vmem:[%s195 + $0x64] sm:$0xf]
        %v983 = vld [vmem:[%s195 + $0x68] sm:$0xf]
        %v984 = vld [vmem:[%s195 + $0x6c] sm:$0xf]
        %v985 = vld [vmem:[%s195 + $0x70] sm:$0xf]
        %v986 = vld [vmem:[%s195 + $0x74] sm:$0xf]
        %v987 = vld [vmem:[%s195 + $0x78] sm:$0xf]
        %v988 = vld [vmem:[%s195 + $0x7c] sm:$0xf]
        %v1021 = vunpack.c.l.b16 %v957
        %v1022 = vunpack.c.l.b16 %v958
        %v1023 = vunpack.c.l.b16 %v959
        %v1024 = vunpack.c.l.b16 %v960
        %v1025 = vunpack.c.l.b16 %v961
        %v1026 = vunpack.c.l.b16 %v962
        %v1027 = vunpack.c.l.b16 %v963
        %v1028 = vunpack.c.l.b16 %v964
        %v1029 = vunpack.c.l.b16 %v965
        %v1030 = vunpack.c.l.b16 %v966
        %v1031 = vunpack.c.l.b16 %v967
        %v1032 = vunpack.c.l.b16 %v968
        %v1033 = vunpack.c.l.b16 %v969
        %v1034 = vunpack.c.l.b16 %v970
        %v1035 = vunpack.c.l.b16 %v971
        %v1036 = vunpack.c.l.b16 %v972
        %v1037 = vunpack.c.l.b16 %v973
        %v1038 = vunpack.c.l.b16 %v974
        %v1039 = vunpack.c.l.b16 %v975
        %v1040 = vunpack.c.l.b16 %v976
        %v1041 = vunpack.c.l.b16 %v977
        %v1042 = vunpack.c.l.b16 %v978
        %v1043 = vunpack.c.l.b16 %v979
        %v1044 = vunpack.c.l.b16 %v980
        %v1045 = vunpack.c.l.b16 %v981
        %v1046 = vunpack.c.l.b16 %v982
        %v1047 = vunpack.c.l.b16 %v983
        %v1048 = vunpack.c.l.b16 %v984
        %v1049 = vunpack.c.l.b16 %v985
        %v1050 = vunpack.c.l.b16 %v986
        %v1051 = vunpack.c.l.b16 %v987
        %v1052 = vunpack.c.l.b16 %v988
        %v1053 = vpack.c.b16 %v1022, %v1021
        %v1054 = vpack.c.b16 %v1024, %v1023
        %v1055 = vpack.c.b16 %v1026, %v1025
        %v1056 = vpack.c.b16 %v1028, %v1027
        %v1057 = vpack.c.b16 %v1030, %v1029
        %v1058 = vpack.c.b16 %v1032, %v1031
        %v1059 = vpack.c.b16 %v1034, %v1033
        %v1060 = vpack.c.b16 %v1036, %v1035
        %v1061 = vpack.c.b16 %v1038, %v1037
        %v1062 = vpack.c.b16 %v1040, %v1039
        %v1063 = vpack.c.b16 %v1042, %v1041
        %v1064 = vpack.c.b16 %v1044, %v1043
        %v1065 = vpack.c.b16 %v1046, %v1045
        %v1066 = vpack.c.b16 %v1048, %v1047
        %v1067 = vpack.c.b16 %v1050, %v1049
        %v1068 = vpack.c.b16 %v1052, %v1051
        %v1070 = vshrl.u32 %v1053, 16
        %v1072 = vrot.slane %v1070, 7
        %v1073 = vshll.u32 %v1053, 16
        %v1075 = vor.u32 %v1072, %v1073
        %v1077 = vshrl.u32 %v1054, 16
        %v1079 = vrot.slane %v1077, 7
        %v1080 = vshll.u32 %v1054, 16
        %v1082 = vor.u32 %v1079, %v1080
        %v1084 = vshrl.u32 %v1055, 16
        %v1086 = vrot.slane %v1084, 7
        %v1087 = vshll.u32 %v1055, 16
        %v1089 = vor.u32 %v1086, %v1087
        %v1091 = vshrl.u32 %v1056, 16
        %v1093 = vrot.slane %v1091, 7
        %v1094 = vshll.u32 %v1056, 16
        %v1096 = vor.u32 %v1093, %v1094
        %v1098 = vshrl.u32 %v1057, 16
        %v1100 = vrot.slane %v1098, 7
        %v1101 = vshll.u32 %v1057, 16
        %v1103 = vor.u32 %v1100, %v1101
        %v1105 = vshrl.u32 %v1058, 16
        %v1107 = vrot.slane %v1105, 7
        %v1108 = vshll.u32 %v1058, 16
        %v1110 = vor.u32 %v1107, %v1108
        %v1112 = vshrl.u32 %v1059, 16
        %v1114 = vrot.slane %v1112, 7
        %v1115 = vshll.u32 %v1059, 16
        %v1117 = vor.u32 %v1114, %v1115
        %v1119 = vshrl.u32 %v1060, 16
        %v1121 = vrot.slane %v1119, 7
        %v1122 = vshll.u32 %v1060, 16
        %v1124 = vor.u32 %v1121, %v1122
        %v1126 = vshrl.u32 %v1061, 16
        %v1128 = vrot.slane %v1126, 7
        %v1129 = vshll.u32 %v1061, 16
        %v1131 = vor.u32 %v1128, %v1129
        %v1133 = vshrl.u32 %v1062, 16
        %v1135 = vrot.slane %v1133, 7
        %v1136 = vshll.u32 %v1062, 16
        %v1138 = vor.u32 %v1135, %v1136
        %v1140 = vshrl.u32 %v1063, 16
        %v1142 = vrot.slane %v1140, 7
        %v1143 = vshll.u32 %v1063, 16
        %v1145 = vor.u32 %v1142, %v1143
        %v1147 = vshrl.u32 %v1064, 16
        %v1149 = vrot.slane %v1147, 7
        %v1150 = vshll.u32 %v1064, 16
        %v1152 = vor.u32 %v1149, %v1150
        %v1154 = vshrl.u32 %v1065, 16
        %v1156 = vrot.slane %v1154, 7
        %v1157 = vshll.u32 %v1065, 16
        %v1159 = vor.u32 %v1156, %v1157
        %v1161 = vshrl.u32 %v1066, 16
        %v1163 = vrot.slane %v1161, 7
        %v1164 = vshll.u32 %v1066, 16
        %v1166 = vor.u32 %v1163, %v1164
        %v1168 = vshrl.u32 %v1067, 16
        %v1170 = vrot.slane %v1168, 7
        %v1171 = vshll.u32 %v1067, 16
        %v1173 = vor.u32 %v1170, %v1171
        %v1175 = vshrl.u32 %v1068, 16
        %v1177 = vrot.slane %v1175, 7
        %v1178 = vshll.u32 %v1068, 16
        %v1180 = vor.u32 %v1177, %v1178
        %1181 = vrot.lane.b32.xlu0 %v1075, 12
        %v1182 = vpop.permute.xlu0 %1181
        %1183 = vrot.lane.b32.xlu0 %v1082, 12
        %v1184 = vpop.permute.xlu0 %1183
        %1185 = vrot.lane.b32.xlu0 %v1089, 12
        %v1186 = vpop.permute.xlu0 %1185
        %1187 = vrot.lane.b32.xlu0 %v1096, 12
        %v1188 = vpop.permute.xlu0 %1187
        %1189 = vrot.lane.b32.xlu0 %v1103, 12
        %v1190 = vpop.permute.xlu0 %1189
        %1191 = vrot.lane.b32.xlu0 %v1110, 12
        %v1192 = vpop.permute.xlu0 %1191
        %1193 = vrot.lane.b32.xlu0 %v1117, 12
        %v1194 = vpop.permute.xlu0 %1193
        %1195 = vrot.lane.b32.xlu0 %v1124, 12
        %v1196 = vpop.permute.xlu0 %1195
        %1197 = vrot.lane.b32.xlu0 %v1131, 12
        %v1198 = vpop.permute.xlu0 %1197
        %1199 = vrot.lane.b32.xlu0 %v1138, 12
        %v1200 = vpop.permute.xlu0 %1199
        %1201 = vrot.lane.b32.xlu0 %v1145, 12
        %v1202 = vpop.permute.xlu0 %1201
        %1203 = vrot.lane.b32.xlu0 %v1152, 12
        %v1204 = vpop.permute.xlu0 %1203
        %1205 = vrot.lane.b32.xlu0 %v1159, 12
        %v1206 = vpop.permute.xlu0 %1205
        %1207 = vrot.lane.b32.xlu0 %v1166, 12
        %v1208 = vpop.permute.xlu0 %1207
        %1209 = vrot.lane.b32.xlu0 %v1173, 12
        %v1210 = vpop.permute.xlu0 %1209
        %1211 = vrot.lane.b32.xlu0 %v1180, 12
        %v1212 = vpop.permute.xlu0 %1211
        %vm1229 = vcmask 130144
        %vm1230 = vmand %vm1229, %vm441
        %v1231 = vld [vmem:[#allocation2] sm:$0xff]
        %v1232 = vsel %vm1230, %v1182, %v1231
        %1233 = vst [vmem:[#allocation2] sm:$0xff] %v1232
        %v1234 = vld [vmem:[#allocation2 + $0x8] sm:$0xff]
        %v1235 = vsel %vm1230, %v1184, %v1234
        %1236 = vst [vmem:[#allocation2 + $0x8] sm:$0xff] %v1235
        %v1237 = vld [vmem:[#allocation2 + $0x10] sm:$0xff]
        %v1238 = vsel %vm1230, %v1186, %v1237
        %1239 = vst [vmem:[#allocation2 + $0x10] sm:$0xff] %v1238
        %v1240 = vld [vmem:[#allocation2 + $0x18] sm:$0xff]
        %v1241 = vsel %vm1230, %v1188, %v1240
        %1242 = vst [vmem:[#allocation2 + $0x18] sm:$0xff] %v1241
        %v1243 = vld [vmem:[#allocation2 + $0x20] sm:$0xff]
        %v1244 = vsel %vm1230, %v1190, %v1243
        %1245 = vst [vmem:[#allocation2 + $0x20] sm:$0xff] %v1244
        %v1246 = vld [vmem:[#allocation2 + $0x28] sm:$0xff]
        %v1247 = vsel %vm1230, %v1192, %v1246
        %1248 = vst [vmem:[#allocation2 + $0x28] sm:$0xff] %v1247
        %v1249 = vld [vmem:[#allocation2 + $0x30] sm:$0xff]
        %v1250 = vsel %vm1230, %v1194, %v1249
        %1251 = vst [vmem:[#allocation2 + $0x30] sm:$0xff] %v1250
        %v1252 = vld [vmem:[#allocation2 + $0x38] sm:$0xff]
        %v1253 = vsel %vm1230, %v1196, %v1252
        %1254 = vst [vmem:[#allocation2 + $0x38] sm:$0xff] %v1253
        %v1255 = vld [vmem:[#allocation2 + $0x40] sm:$0xff]
        %v1256 = vsel %vm1230, %v1198, %v1255
        %1257 = vst [vmem:[#allocation2 + $0x40] sm:$0xff] %v1256
        %v1258 = vld [vmem:[#allocation2 + $0x48] sm:$0xff]
        %v1259 = vsel %vm1230, %v1200, %v1258
        %1260 = vst [vmem:[#allocation2 + $0x48] sm:$0xff] %v1259
        %v1261 = vld [vmem:[#allocation2 + $0x50] sm:$0xff]
        %v1262 = vsel %vm1230, %v1202, %v1261
        %1263 = vst [vmem:[#allocation2 + $0x50] sm:$0xff] %v1262
        %v1264 = vld [vmem:[#allocation2 + $0x58] sm:$0xff]
        %v1265 = vsel %vm1230, %v1204, %v1264
        %1266 = vst [vmem:[#allocation2 + $0x58] sm:$0xff] %v1265
        %v1267 = vld [vmem:[#allocation2 + $0x60] sm:$0xff]
        %v1268 = vsel %vm1230, %v1206, %v1267
        %1269 = vst [vmem:[#allocation2 + $0x60] sm:$0xff] %v1268
        %v1270 = vld [vmem:[#allocation2 + $0x68] sm:$0xff]
        %v1271 = vsel %vm1230, %v1208, %v1270
        %1272 = vst [vmem:[#allocation2 + $0x68] sm:$0xff] %v1271
        %v1273 = vld [vmem:[#allocation2 + $0x70] sm:$0xff]
        %v1274 = vsel %vm1230, %v1210, %v1273
        %1275 = vst [vmem:[#allocation2 + $0x70] sm:$0xff] %v1274
        %v1276 = vld [vmem:[#allocation2 + $0x78] sm:$0xff]
        %v1277 = vsel %vm1230, %v1212, %v1276
        %1278 = vst [vmem:[#allocation2 + $0x78] sm:$0xff] %v1277
        %v1279 = vld [vmem:[%s195] sm:$0xf]
        %v1280 = vld [vmem:[%s195 + $0x4] sm:$0xf]
        %v1281 = vld [vmem:[%s195 + $0x8] sm:$0xf]
        %v1282 = vld [vmem:[%s195 + $0xc] sm:$0xf]
        %v1283 = vld [vmem:[%s195 + $0x10] sm:$0xf]
        %v1284 = vld [vmem:[%s195 + $0x14] sm:$0xf]
        %v1285 = vld [vmem:[%s195 + $0x18] sm:$0xf]
        %v1286 = vld [vmem:[%s195 + $0x1c] sm:$0xf]
        %v1287 = vld [vmem:[%s195 + $0x20] sm:$0xf]
        %v1288 = vld [vmem:[%s195 + $0x24] sm:$0xf]
        %v1289 = vld [vmem:[%s195 + $0x28] sm:$0xf]
        %v1290 = vld [vmem:[%s195 + $0x2c] sm:$0xf]
        %v1291 = vld [vmem:[%s195 + $0x30] sm:$0xf]
        %v1292 = vld [vmem:[%s195 + $0x34] sm:$0xf]
        %v1293 = vld [vmem:[%s195 + $0x38] sm:$0xf]
        %v1294 = vld [vmem:[%s195 + $0x3c] sm:$0xf]
        %v1295 = vld [vmem:[%s195 + $0x40] sm:$0xf]
        %v1296 = vld [vmem:[%s195 + $0x44] sm:$0xf]
        %v1297 = vld [vmem:[%s195 + $0x48] sm:$0xf]
        %v1298 = vld [vmem:[%s195 + $0x4c] sm:$0xf]
        %v1299 = vld [vmem:[%s195 + $0x50] sm:$0xf]
        %v1300 = vld [vmem:[%s195 + $0x54] sm:$0xf]
        %v1301 = vld [vmem:[%s195 + $0x58] sm:$0xf]
        %v1302 = vld [vmem:[%s195 + $0x5c] sm:$0xf]
        %v1303 = vld [vmem:[%s195 + $0x60] sm:$0xf]
        %v1304 = vld [vmem:[%s195 + $0x64] sm:$0xf]
        %v1305 = vld [vmem:[%s195 + $0x68] sm:$0xf]
        %v1306 = vld [vmem:[%s195 + $0x6c] sm:$0xf]
        %v1307 = vld [vmem:[%s195 + $0x70] sm:$0xf]
        %v1308 = vld [vmem:[%s195 + $0x74] sm:$0xf]
        %v1309 = vld [vmem:[%s195 + $0x78] sm:$0xf]
        %v1310 = vld [vmem:[%s195 + $0x7c] sm:$0xf]
        %v1343 = vunpack.c.l.b16 %v1279
        %v1344 = vunpack.c.l.b16 %v1280
        %v1345 = vunpack.c.l.b16 %v1281
        %v1346 = vunpack.c.l.b16 %v1282
        %v1347 = vunpack.c.l.b16 %v1283
        %v1348 = vunpack.c.l.b16 %v1284
        %v1349 = vunpack.c.l.b16 %v1285
        %v1350 = vunpack.c.l.b16 %v1286
        %v1351 = vunpack.c.l.b16 %v1287
        %v1352 = vunpack.c.l.b16 %v1288
        %v1353 = vunpack.c.l.b16 %v1289
        %v1354 = vunpack.c.l.b16 %v1290
        %v1355 = vunpack.c.l.b16 %v1291
        %v1356 = vunpack.c.l.b16 %v1292
        %v1357 = vunpack.c.l.b16 %v1293
        %v1358 = vunpack.c.l.b16 %v1294
        %v1359 = vunpack.c.l.b16 %v1295
        %v1360 = vunpack.c.l.b16 %v1296
        %v1361 = vunpack.c.l.b16 %v1297
        %v1362 = vunpack.c.l.b16 %v1298
        %v1363 = vunpack.c.l.b16 %v1299
        %v1364 = vunpack.c.l.b16 %v1300
        %v1365 = vunpack.c.l.b16 %v1301
        %v1366 = vunpack.c.l.b16 %v1302
        %v1367 = vunpack.c.l.b16 %v1303
        %v1368 = vunpack.c.l.b16 %v1304
        %v1369 = vunpack.c.l.b16 %v1305
        %v1370 = vunpack.c.l.b16 %v1306
        %v1371 = vunpack.c.l.b16 %v1307
        %v1372 = vunpack.c.l.b16 %v1308
        %v1373 = vunpack.c.l.b16 %v1309
        %v1374 = vunpack.c.l.b16 %v1310
        %v1375 = vpack.c.b16 %v1344, %v1343
        %v1376 = vpack.c.b16 %v1346, %v1345
        %v1377 = vpack.c.b16 %v1348, %v1347
        %v1378 = vpack.c.b16 %v1350, %v1349
        %v1379 = vpack.c.b16 %v1352, %v1351
        %v1380 = vpack.c.b16 %v1354, %v1353
        %v1381 = vpack.c.b16 %v1356, %v1355
        %v1382 = vpack.c.b16 %v1358, %v1357
        %v1383 = vpack.c.b16 %v1360, %v1359
        %v1384 = vpack.c.b16 %v1362, %v1361
        %v1385 = vpack.c.b16 %v1364, %v1363
        %v1386 = vpack.c.b16 %v1366, %v1365
        %v1387 = vpack.c.b16 %v1368, %v1367
        %v1388 = vpack.c.b16 %v1370, %v1369
        %v1389 = vpack.c.b16 %v1372, %v1371
        %v1390 = vpack.c.b16 %v1374, %v1373
        %1391 = vrot.lane.b32.xlu0 %v1375, 16
        %v1392 = vpop.permute.xlu0 %1391
        %1393 = vrot.lane.b32.xlu0 %v1376, 16
        %v1394 = vpop.permute.xlu0 %1393
        %1395 = vrot.lane.b32.xlu0 %v1377, 16
        %v1396 = vpop.permute.xlu0 %1395
        %1397 = vrot.lane.b32.xlu0 %v1378, 16
        %v1398 = vpop.permute.xlu0 %1397
        %1399 = vrot.lane.b32.xlu0 %v1379, 16
        %v1400 = vpop.permute.xlu0 %1399
        %1401 = vrot.lane.b32.xlu0 %v1380, 16
        %v1402 = vpop.permute.xlu0 %1401
        %1403 = vrot.lane.b32.xlu0 %v1381, 16
        %v1404 = vpop.permute.xlu0 %1403
        %1405 = vrot.lane.b32.xlu0 %v1382, 16
        %v1406 = vpop.permute.xlu0 %1405
        %1407 = vrot.lane.b32.xlu0 %v1383, 16
        %v1408 = vpop.permute.xlu0 %1407
        %1409 = vrot.lane.b32.xlu0 %v1384, 16
        %v1410 = vpop.permute.xlu0 %1409
        %1411 = vrot.lane.b32.xlu0 %v1385, 16
        %v1412 = vpop.permute.xlu0 %1411
        %1413 = vrot.lane.b32.xlu0 %v1386, 16
        %v1414 = vpop.permute.xlu0 %1413
        %1415 = vrot.lane.b32.xlu0 %v1387, 16
        %v1416 = vpop.permute.xlu0 %1415
        %1417 = vrot.lane.b32.xlu0 %v1388, 16
        %v1418 = vpop.permute.xlu0 %1417
        %1419 = vrot.lane.b32.xlu0 %v1389, 16
        %v1420 = vpop.permute.xlu0 %1419
        %1421 = vrot.lane.b32.xlu0 %v1390, 16
        %v1422 = vpop.permute.xlu0 %1421
        %vm1439 = vcmask 162944
        %1440 = vst.msk [vmem:[#allocation2] sm:$0xff] %vm1439, %v1392
        %1441 = vst.msk [vmem:[#allocation2 + $0x8] sm:$0xff] %vm1439, %v1394
        %1442 = vst.msk [vmem:[#allocation2 + $0x10] sm:$0xff] %vm1439, %v1396
        %1443 = vst.msk [vmem:[#allocation2 + $0x18] sm:$0xff] %vm1439, %v1398
        %1444 = vst.msk [vmem:[#allocation2 + $0x20] sm:$0xff] %vm1439, %v1400
        %1445 = vst.msk [vmem:[#allocation2 + $0x28] sm:$0xff] %vm1439, %v1402
        %1446 = vst.msk [vmem:[#allocation2 + $0x30] sm:$0xff] %vm1439, %v1404
        %1447 = vst.msk [vmem:[#allocation2 + $0x38] sm:$0xff] %vm1439, %v1406
        %1448 = vst.msk [vmem:[#allocation2 + $0x40] sm:$0xff] %vm1439, %v1408
        %1449 = vst.msk [vmem:[#allocation2 + $0x48] sm:$0xff] %vm1439, %v1410
        %1450 = vst.msk [vmem:[#allocation2 + $0x50] sm:$0xff] %vm1439, %v1412
        %1451 = vst.msk [vmem:[#allocation2 + $0x58] sm:$0xff] %vm1439, %v1414
        %1452 = vst.msk [vmem:[#allocation2 + $0x60] sm:$0xff] %vm1439, %v1416
        %1453 = vst.msk [vmem:[#allocation2 + $0x68] sm:$0xff] %vm1439, %v1418
        %1454 = vst.msk [vmem:[#allocation2 + $0x70] sm:$0xff] %vm1439, %v1420
        %1455 = vst.msk [vmem:[#allocation2 + $0x78] sm:$0xff] %vm1439, %v1422
        %v1456 = vld [vmem:[%s195] sm:$0xf]
        %v1457 = vld [vmem:[%s195 + $0x4] sm:$0xf]
        %v1458 = vld [vmem:[%s195 + $0x8] sm:$0xf]
        %v1459 = vld [vmem:[%s195 + $0xc] sm:$0xf]
        %v1460 = vld [vmem:[%s195 + $0x10] sm:$0xf]
        %v1461 = vld [vmem:[%s195 + $0x14] sm:$0xf]
        %v1462 = vld [vmem:[%s195 + $0x18] sm:$0xf]
        %v1463 = vld [vmem:[%s195 + $0x1c] sm:$0xf]
        %v1464 = vld [vmem:[%s195 + $0x20] sm:$0xf]
        %v1465 = vld [vmem:[%s195 + $0x24] sm:$0xf]
        %v1466 = vld [vmem:[%s195 + $0x28] sm:$0xf]
        %v1467 = vld [vmem:[%s195 + $0x2c] sm:$0xf]
        %v1468 = vld [vmem:[%s195 + $0x30] sm:$0xf]
        %v1469 = vld [vmem:[%s195 + $0x34] sm:$0xf]
        %v1470 = vld [vmem:[%s195 + $0x38] sm:$0xf]
        %v1471 = vld [vmem:[%s195 + $0x3c] sm:$0xf]
        %v1472 = vld [vmem:[%s195 + $0x40] sm:$0xf]
        %v1473 = vld [vmem:[%s195 + $0x44] sm:$0xf]
        %v1474 = vld [vmem:[%s195 + $0x48] sm:$0xf]
        %v1475 = vld [vmem:[%s195 + $0x4c] sm:$0xf]
        %v1476 = vld [vmem:[%s195 + $0x50] sm:$0xf]
        %v1477 = vld [vmem:[%s195 + $0x54] sm:$0xf]
        %v1478 = vld [vmem:[%s195 + $0x58] sm:$0xf]
        %v1479 = vld [vmem:[%s195 + $0x5c] sm:$0xf]
        %v1480 = vld [vmem:[%s195 + $0x60] sm:$0xf]
        %v1481 = vld [vmem:[%s195 + $0x64] sm:$0xf]
        %v1482 = vld [vmem:[%s195 + $0x68] sm:$0xf]
        %v1483 = vld [vmem:[%s195 + $0x6c] sm:$0xf]
        %v1484 = vld [vmem:[%s195 + $0x70] sm:$0xf]
        %v1485 = vld [vmem:[%s195 + $0x74] sm:$0xf]
        %v1486 = vld [vmem:[%s195 + $0x78] sm:$0xf]
        %v1487 = vld [vmem:[%s195 + $0x7c] sm:$0xf]
        %v1520 = vunpack.c.l.b16 %v1456
        %v1521 = vunpack.c.l.b16 %v1457
        %v1522 = vunpack.c.l.b16 %v1458
        %v1523 = vunpack.c.l.b16 %v1459
        %v1524 = vunpack.c.l.b16 %v1460
        %v1525 = vunpack.c.l.b16 %v1461
        %v1526 = vunpack.c.l.b16 %v1462
        %v1527 = vunpack.c.l.b16 %v1463
        %v1528 = vunpack.c.l.b16 %v1464
        %v1529 = vunpack.c.l.b16 %v1465
        %v1530 = vunpack.c.l.b16 %v1466
        %v1531 = vunpack.c.l.b16 %v1467
        %v1532 = vunpack.c.l.b16 %v1468
        %v1533 = vunpack.c.l.b16 %v1469
        %v1534 = vunpack.c.l.b16 %v1470
        %v1535 = vunpack.c.l.b16 %v1471
        %v1536 = vunpack.c.l.b16 %v1472
        %v1537 = vunpack.c.l.b16 %v1473
        %v1538 = vunpack.c.l.b16 %v1474
        %v1539 = vunpack.c.l.b16 %v1475
        %v1540 = vunpack.c.l.b16 %v1476
        %v1541 = vunpack.c.l.b16 %v1477
        %v1542 = vunpack.c.l.b16 %v1478
        %v1543 = vunpack.c.l.b16 %v1479
        %v1544 = vunpack.c.l.b16 %v1480
        %v1545 = vunpack.c.l.b16 %v1481
        %v1546 = vunpack.c.l.b16 %v1482
        %v1547 = vunpack.c.l.b16 %v1483
        %v1548 = vunpack.c.l.b16 %v1484
        %v1549 = vunpack.c.l.b16 %v1485
        %v1550 = vunpack.c.l.b16 %v1486
        %v1551 = vunpack.c.l.b16 %v1487
        %v1552 = vpack.c.b16 %v1521, %v1520
        %v1553 = vpack.c.b16 %v1523, %v1522
        %v1554 = vpack.c.b16 %v1525, %v1524
        %v1555 = vpack.c.b16 %v1527, %v1526
        %v1556 = vpack.c.b16 %v1529, %v1528
        %v1557 = vpack.c.b16 %v1531, %v1530
        %v1558 = vpack.c.b16 %v1533, %v1532
        %v1559 = vpack.c.b16 %v1535, %v1534
        %v1560 = vpack.c.b16 %v1537, %v1536
        %v1561 = vpack.c.b16 %v1539, %v1538
        %v1562 = vpack.c.b16 %v1541, %v1540
        %v1563 = vpack.c.b16 %v1543, %v1542
        %v1564 = vpack.c.b16 %v1545, %v1544
        %v1565 = vpack.c.b16 %v1547, %v1546
        %v1566 = vpack.c.b16 %v1549, %v1548
        %v1567 = vpack.c.b16 %v1551, %v1550
        %v1569 = vshrl.u32 %v1552, 16
        %v1571 = vshll.u32 %v1552, 16
        %v1573 = vrot.slane %v1571, 1
        %v1574 = vor.u32 %v1569, %v1573
        %v1576 = vshrl.u32 %v1553, 16
        %v1578 = vshll.u32 %v1553, 16
        %v1580 = vrot.slane %v1578, 1
        %v1581 = vor.u32 %v1576, %v1580
        %v1583 = vshrl.u32 %v1554, 16
        %v1585 = vshll.u32 %v1554, 16
        %v1587 = vrot.slane %v1585, 1
        %v1588 = vor.u32 %v1583, %v1587
        %v1590 = vshrl.u32 %v1555, 16
        %v1592 = vshll.u32 %v1555, 16
        %v1594 = vrot.slane %v1592, 1
        %v1595 = vor.u32 %v1590, %v1594
        %v1597 = vshrl.u32 %v1556, 16
        %v1599 = vshll.u32 %v1556, 16
        %v1601 = vrot.slane %v1599, 1
        %v1602 = vor.u32 %v1597, %v1601
        %v1604 = vshrl.u32 %v1557, 16
        %v1606 = vshll.u32 %v1557, 16
        %v1608 = vrot.slane %v1606, 1
        %v1609 = vor.u32 %v1604, %v1608
        %v1611 = vshrl.u32 %v1558, 16
        %v1613 = vshll.u32 %v1558, 16
        %v1615 = vrot.slane %v1613, 1
        %v1616 = vor.u32 %v1611, %v1615
        %v1618 = vshrl.u32 %v1559, 16
        %v1620 = vshll.u32 %v1559, 16
        %v1622 = vrot.slane %v1620, 1
        %v1623 = vor.u32 %v1618, %v1622
        %v1625 = vshrl.u32 %v1560, 16
        %v1627 = vshll.u32 %v1560, 16
        %v1629 = vrot.slane %v1627, 1
        %v1630 = vor.u32 %v1625, %v1629
        %v1632 = vshrl.u32 %v1561, 16
        %v1634 = vshll.u32 %v1561, 16
        %v1636 = vrot.slane %v1634, 1
        %v1637 = vor.u32 %v1632, %v1636
        %v1639 = vshrl.u32 %v1562, 16
        %v1641 = vshll.u32 %v1562, 16
        %v1643 = vrot.slane %v1641, 1
        %v1644 = vor.u32 %v1639, %v1643
        %v1646 = vshrl.u32 %v1563, 16
        %v1648 = vshll.u32 %v1563, 16
        %v1650 = vrot.slane %v1648, 1
        %v1651 = vor.u32 %v1646, %v1650
        %v1653 = vshrl.u32 %v1564, 16
        %v1655 = vshll.u32 %v1564, 16
        %v1657 = vrot.slane %v1655, 1
        %v1658 = vor.u32 %v1653, %v1657
        %v1660 = vshrl.u32 %v1565, 16
        %v1662 = vshll.u32 %v1565, 16
        %v1664 = vrot.slane %v1662, 1
        %v1665 = vor.u32 %v1660, %v1664
        %v1667 = vshrl.u32 %v1566, 16
        %v1669 = vshll.u32 %v1566, 16
        %v1671 = vrot.slane %v1669, 1
        %v1672 = vor.u32 %v1667, %v1671
        %v1674 = vshrl.u32 %v1567, 16
        %v1676 = vshll.u32 %v1567, 16
        %v1678 = vrot.slane %v1676, 1
        %v1679 = vor.u32 %v1674, %v1678
        %1680 = vrot.lane.b32.xlu0 %v1574, 20
        %v1681 = vpop.permute.xlu0 %1680
        %1682 = vrot.lane.b32.xlu0 %v1581, 20
        %v1683 = vpop.permute.xlu0 %1682
        %1684 = vrot.lane.b32.xlu0 %v1588, 20
        %v1685 = vpop.permute.xlu0 %1684
        %1686 = vrot.lane.b32.xlu0 %v1595, 20
        %v1687 = vpop.permute.xlu0 %1686
        %1688 = vrot.lane.b32.xlu0 %v1602, 20
        %v1689 = vpop.permute.xlu0 %1688
        %1690 = vrot.lane.b32.xlu0 %v1609, 20
        %v1691 = vpop.permute.xlu0 %1690
        %1692 = vrot.lane.b32.xlu0 %v1616, 20
        %v1693 = vpop.permute.xlu0 %1692
        %1694 = vrot.lane.b32.xlu0 %v1623, 20
        %v1695 = vpop.permute.xlu0 %1694
        %1696 = vrot.lane.b32.xlu0 %v1630, 20
        %v1697 = vpop.permute.xlu0 %1696
        %1698 = vrot.lane.b32.xlu0 %v1637, 20
        %v1699 = vpop.permute.xlu0 %1698
        %1700 = vrot.lane.b32.xlu0 %v1644, 20
        %v1701 = vpop.permute.xlu0 %1700
        %1702 = vrot.lane.b32.xlu0 %v1651, 20
        %v1703 = vpop.permute.xlu0 %1702
        %1704 = vrot.lane.b32.xlu0 %v1658, 20
        %v1705 = vpop.permute.xlu0 %1704
        %1706 = vrot.lane.b32.xlu0 %v1665, 20
        %v1707 = vpop.permute.xlu0 %1706
        %1708 = vrot.lane.b32.xlu0 %v1672, 20
        %v1709 = vpop.permute.xlu0 %1708
        %1710 = vrot.lane.b32.xlu0 %v1679, 20
        %v1711 = vpop.permute.xlu0 %1710
        %vm1728 = vcmask 195744
        %vm1729 = vmand %vm1728, %vm910
        %v1730 = vld [vmem:[#allocation2] sm:$0xff]
        %v1731 = vsel %vm1729, %v1681, %v1730
        %1732 = vst [vmem:[#allocation2] sm:$0xff] %v1731
        %v1733 = vld [vmem:[#allocation2 + $0x8] sm:$0xff]
        %v1734 = vsel %vm1729, %v1683, %v1733
        %1735 = vst [vmem:[#allocation2 + $0x8] sm:$0xff] %v1734
        %v1736 = vld [vmem:[#allocation2 + $0x10] sm:$0xff]
        %v1737 = vsel %vm1729, %v1685, %v1736
        %1738 = vst [vmem:[#allocation2 + $0x10] sm:$0xff] %v1737
        %v1739 = vld [vmem:[#allocation2 + $0x18] sm:$0xff]
        %v1740 = vsel %vm1729, %v1687, %v1739
        %1741 = vst [vmem:[#allocation2 + $0x18] sm:$0xff] %v1740
        %v1742 = vld [vmem:[#allocation2 + $0x20] sm:$0xff]
        %v1743 = vsel %vm1729, %v1689, %v1742
        %1744 = vst [vmem:[#allocation2 + $0x20] sm:$0xff] %v1743
        %v1745 = vld [vmem:[#allocation2 + $0x28] sm:$0xff]
        %v1746 = vsel %vm1729, %v1691, %v1745
        %1747 = vst [vmem:[#allocation2 + $0x28] sm:$0xff] %v1746
        %v1748 = vld [vmem:[#allocation2 + $0x30] sm:$0xff]
        %v1749 = vsel %vm1729, %v1693, %v1748
        %1750 = vst [vmem:[#allocation2 + $0x30] sm:$0xff] %v1749
        %v1751 = vld [vmem:[#allocation2 + $0x38] sm:$0xff]
        %v1752 = vsel %vm1729, %v1695, %v1751
        %1753 = vst [vmem:[#allocation2 + $0x38] sm:$0xff] %v1752
        %v1754 = vld [vmem:[#allocation2 + $0x40] sm:$0xff]
        %v1755 = vsel %vm1729, %v1697, %v1754
        %1756 = vst [vmem:[#allocation2 + $0x40] sm:$0xff] %v1755
        %v1757 = vld [vmem:[#allocation2 + $0x48] sm:$0xff]
        %v1758 = vsel %vm1729, %v1699, %v1757
        %1759 = vst [vmem:[#allocation2 + $0x48] sm:$0xff] %v1758
        %v1760 = vld [vmem:[#allocation2 + $0x50] sm:$0xff]
        %v1761 = vsel %vm1729, %v1701, %v1760
        %1762 = vst [vmem:[#allocation2 + $0x50] sm:$0xff] %v1761
        %v1763 = vld [vmem:[#allocation2 + $0x58] sm:$0xff]
        %v1764 = vsel %vm1729, %v1703, %v1763
        %1765 = vst [vmem:[#allocation2 + $0x58] sm:$0xff] %v1764
        %v1766 = vld [vmem:[#allocation2 + $0x60] sm:$0xff]
        %v1767 = vsel %vm1729, %v1705, %v1766
        %1768 = vst [vmem:[#allocation2 + $0x60] sm:$0xff] %v1767
        %v1769 = vld [vmem:[#allocation2 + $0x68] sm:$0xff]
        %v1770 = vsel %vm1729, %v1707, %v1769
        %1771 = vst [vmem:[#allocation2 + $0x68] sm:$0xff] %v1770
        %v1772 = vld [vmem:[#allocation2 + $0x70] sm:$0xff]
        %v1773 = vsel %vm1729, %v1709, %v1772
        %1774 = vst [vmem:[#allocation2 + $0x70] sm:$0xff] %v1773
        %v1775 = vld [vmem:[#allocation2 + $0x78] sm:$0xff]
        %v1776 = vsel %vm1729, %v1711, %v1775
        %1777 = vst [vmem:[#allocation2 + $0x78] sm:$0xff] %v1776
        %s1778 = scalar_lea.vmem %s195, 8
        %v1779 = vld [vmem:[%s1778] sm:$0xf]
        %v1780 = vld [vmem:[%s1778 + $0x4] sm:$0xf]
        %v1781 = vld [vmem:[%s1778 + $0x8] sm:$0xf]
        %v1782 = vld [vmem:[%s1778 + $0xc] sm:$0xf]
        %v1783 = vld [vmem:[%s1778 + $0x10] sm:$0xf]
        %v1784 = vld [vmem:[%s1778 + $0x14] sm:$0xf]
        %v1785 = vld [vmem:[%s1778 + $0x18] sm:$0xf]
        %v1786 = vld [vmem:[%s1778 + $0x1c] sm:$0xf]
        %v1787 = vld [vmem:[%s1778 + $0x20] sm:$0xf]
        %v1788 = vld [vmem:[%s1778 + $0x24] sm:$0xf]
        %v1789 = vld [vmem:[%s1778 + $0x28] sm:$0xf]
        %v1790 = vld [vmem:[%s1778 + $0x2c] sm:$0xf]
        %v1791 = vld [vmem:[%s1778 + $0x30] sm:$0xf]
        %v1792 = vld [vmem:[%s1778 + $0x34] sm:$0xf]
        %v1793 = vld [vmem:[%s1778 + $0x38] sm:$0xf]
        %v1794 = vld [vmem:[%s1778 + $0x3c] sm:$0xf]
        %v1795 = vld [vmem:[%s1778 + $0x40] sm:$0xf]
        %v1796 = vld [vmem:[%s1778 + $0x44] sm:$0xf]
        %v1797 = vld [vmem:[%s1778 + $0x48] sm:$0xf]
        %v1798 = vld [vmem:[%s1778 + $0x4c] sm:$0xf]
        %v1799 = vld [vmem:[%s1778 + $0x50] sm:$0xf]
        %v1800 = vld [vmem:[%s1778 + $0x54] sm:$0xf]
        %v1801 = vld [vmem:[%s1778 + $0x58] sm:$0xf]
        %v1802 = vld [vmem:[%s1778 + $0x5c] sm:$0xf]
        %v1803 = vld [vmem:[%s1778 + $0x60] sm:$0xf]
        %v1804 = vld [vmem:[%s1778 + $0x64] sm:$0xf]
        %v1805 = vld [vmem:[%s1778 + $0x68] sm:$0xf]
        %v1806 = vld [vmem:[%s1778 + $0x6c] sm:$0xf]
        %v1807 = vld [vmem:[%s1778 + $0x70] sm:$0xf]
        %v1808 = vld [vmem:[%s1778 + $0x74] sm:$0xf]
        %v1839 = vunpack.c.l.b16 %v1779
        %v1840 = vunpack.c.l.b16 %v1780
        %v1841 = vunpack.c.l.b16 %v1781
        %v1842 = vunpack.c.l.b16 %v1782
        %v1843 = vunpack.c.l.b16 %v1783
        %v1844 = vunpack.c.l.b16 %v1784
        %v1845 = vunpack.c.l.b16 %v1785
        %v1846 = vunpack.c.l.b16 %v1786
        %v1847 = vunpack.c.l.b16 %v1787
        %v1848 = vunpack.c.l.b16 %v1788
        %v1849 = vunpack.c.l.b16 %v1789
        %v1850 = vunpack.c.l.b16 %v1790
        %v1851 = vunpack.c.l.b16 %v1791
        %v1852 = vunpack.c.l.b16 %v1792
        %v1853 = vunpack.c.l.b16 %v1793
        %v1854 = vunpack.c.l.b16 %v1794
        %v1855 = vunpack.c.l.b16 %v1795
        %v1856 = vunpack.c.l.b16 %v1796
        %v1857 = vunpack.c.l.b16 %v1797
        %v1858 = vunpack.c.l.b16 %v1798
        %v1859 = vunpack.c.l.b16 %v1799
        %v1860 = vunpack.c.l.b16 %v1800
        %v1861 = vunpack.c.l.b16 %v1801
        %v1862 = vunpack.c.l.b16 %v1802
        %v1863 = vunpack.c.l.b16 %v1803
        %v1864 = vunpack.c.l.b16 %v1804
        %v1865 = vunpack.c.l.b16 %v1805
        %v1866 = vunpack.c.l.b16 %v1806
        %v1867 = vunpack.c.l.b16 %v1807
        %v1868 = vunpack.c.l.b16 %v1808
        %v1869 = vpack.c.b16 %v1840, %v1839
        %v1870 = vpack.c.b16 %v1842, %v1841
        %v1871 = vpack.c.b16 %v1844, %v1843
        %v1872 = vpack.c.b16 %v1846, %v1845
        %v1873 = vpack.c.b16 %v1848, %v1847
        %v1874 = vpack.c.b16 %v1850, %v1849
        %v1875 = vpack.c.b16 %v1852, %v1851
        %v1876 = vpack.c.b16 %v1854, %v1853
        %v1877 = vpack.c.b16 %v1856, %v1855
        %v1878 = vpack.c.b16 %v1858, %v1857
        %v1879 = vpack.c.b16 %v1860, %v1859
        %v1880 = vpack.c.b16 %v1862, %v1861
        %v1881 = vpack.c.b16 %v1864, %v1863
        %v1882 = vpack.c.b16 %v1866, %v1865
        %v1883 = vpack.c.b16 %v1868, %v1867
        %v1885 = vshrl.u32 %v1869, 16
        %v1887 = vrot.slane %v1885, 7
        %v1888 = vshll.u32 %v1869, 16
        %v1890 = vor.u32 %v1887, %v1888
        %v1892 = vshrl.u32 %v1870, 16
        %v1894 = vrot.slane %v1892, 7
        %v1895 = vshll.u32 %v1870, 16
        %v1897 = vor.u32 %v1894, %v1895
        %v1899 = vshrl.u32 %v1871, 16
        %v1901 = vrot.slane %v1899, 7
        %v1902 = vshll.u32 %v1871, 16
        %v1904 = vor.u32 %v1901, %v1902
        %v1906 = vshrl.u32 %v1872, 16
        %v1908 = vrot.slane %v1906, 7
        %v1909 = vshll.u32 %v1872, 16
        %v1911 = vor.u32 %v1908, %v1909
        %v1913 = vshrl.u32 %v1873, 16
        %v1915 = vrot.slane %v1913, 7
        %v1916 = vshll.u32 %v1873, 16
        %v1918 = vor.u32 %v1915, %v1916
        %v1920 = vshrl.u32 %v1874, 16
        %v1922 = vrot.slane %v1920, 7
        %v1923 = vshll.u32 %v1874, 16
        %v1925 = vor.u32 %v1922, %v1923
        %v1927 = vshrl.u32 %v1875, 16
        %v1929 = vrot.slane %v1927, 7
        %v1930 = vshll.u32 %v1875, 16
        %v1932 = vor.u32 %v1929, %v1930
        %v1934 = vshrl.u32 %v1876, 16
        %v1936 = vrot.slane %v1934, 7
        %v1937 = vshll.u32 %v1876, 16
        %v1939 = vor.u32 %v1936, %v1937
        %v1941 = vshrl.u32 %v1877, 16
        %v1943 = vrot.slane %v1941, 7
        %v1944 = vshll.u32 %v1877, 16
        %v1946 = vor.u32 %v1943, %v1944
        %v1948 = vshrl.u32 %v1878, 16
        %v1950 = vrot.slane %v1948, 7
        %v1951 = vshll.u32 %v1878, 16
        %v1953 = vor.u32 %v1950, %v1951
        %v1955 = vshrl.u32 %v1879, 16
        %v1957 = vrot.slane %v1955, 7
        %v1958 = vshll.u32 %v1879, 16
        %v1960 = vor.u32 %v1957, %v1958
        %v1962 = vshrl.u32 %v1880, 16
        %v1964 = vrot.slane %v1962, 7
        %v1965 = vshll.u32 %v1880, 16
        %v1967 = vor.u32 %v1964, %v1965
        %v1969 = vshrl.u32 %v1881, 16
        %v1971 = vrot.slane %v1969, 7
        %v1972 = vshll.u32 %v1881, 16
        %v1974 = vor.u32 %v1971, %v1972
        %v1976 = vshrl.u32 %v1882, 16
        %v1978 = vrot.slane %v1976, 7
        %v1979 = vshll.u32 %v1882, 16
        %v1981 = vor.u32 %v1978, %v1979
        %v1983 = vshrl.u32 %v1883, 16
        %v1985 = vrot.slane %v1983, 7
        %v1986 = vshll.u32 %v1883, 16
        %v1988 = vor.u32 %v1985, %v1986
        %1989 = vrot.lane.b32.xlu0 %v1890, 24
        %v1990 = vpop.permute.xlu0 %1989
        %1991 = vrot.lane.b32.xlu0 %v1897, 24
        %v1992 = vpop.permute.xlu0 %1991
        %1993 = vrot.lane.b32.xlu0 %v1904, 24
        %v1994 = vpop.permute.xlu0 %1993
        %1995 = vrot.lane.b32.xlu0 %v1911, 24
        %v1996 = vpop.permute.xlu0 %1995
        %1997 = vrot.lane.b32.xlu0 %v1918, 24
        %v1998 = vpop.permute.xlu0 %1997
        %1999 = vrot.lane.b32.xlu0 %v1925, 24
        %v2000 = vpop.permute.xlu0 %1999
        %2001 = vrot.lane.b32.xlu0 %v1932, 24
        %v2002 = vpop.permute.xlu0 %2001
        %2003 = vrot.lane.b32.xlu0 %v1939, 24
        %v2004 = vpop.permute.xlu0 %2003
        %2005 = vrot.lane.b32.xlu0 %v1946, 24
        %v2006 = vpop.permute.xlu0 %2005
        %2007 = vrot.lane.b32.xlu0 %v1953, 24
        %v2008 = vpop.permute.xlu0 %2007
        %2009 = vrot.lane.b32.xlu0 %v1960, 24
        %v2010 = vpop.permute.xlu0 %2009
        %2011 = vrot.lane.b32.xlu0 %v1967, 24
        %v2012 = vpop.permute.xlu0 %2011
        %2013 = vrot.lane.b32.xlu0 %v1974, 24
        %v2014 = vpop.permute.xlu0 %2013
        %2015 = vrot.lane.b32.xlu0 %v1981, 24
        %v2016 = vpop.permute.xlu0 %2015
        %2017 = vrot.lane.b32.xlu0 %v1988, 24
        %v2018 = vpop.permute.xlu0 %2017
        %vm2034 = vcmask 228544
        %vm2035 = vmand %vm2034, %vm441
        %v2036 = vld [vmem:[#allocation2] sm:$0xff]
        %v2037 = vsel %vm2035, %v1990, %v2036
        %2038 = vst [vmem:[#allocation2] sm:$0xff] %v2037
        %v2039 = vld [vmem:[#allocation2 + $0x8] sm:$0xff]
        %v2040 = vsel %vm2035, %v1992, %v2039
        %2041 = vst [vmem:[#allocation2 + $0x8] sm:$0xff] %v2040
        %v2042 = vld [vmem:[#allocation2 + $0x10] sm:$0xff]
        %v2043 = vsel %vm2035, %v1994, %v2042
        %2044 = vst [vmem:[#allocation2 + $0x10] sm:$0xff] %v2043
        %v2045 = vld [vmem:[#allocation2 + $0x18] sm:$0xff]
        %v2046 = vsel %vm2035, %v1996, %v2045
        %2047 = vst [vmem:[#allocation2 + $0x18] sm:$0xff] %v2046
        %v2048 = vld [vmem:[#allocation2 + $0x20] sm:$0xff]
        %v2049 = vsel %vm2035, %v1998, %v2048
        %2050 = vst [vmem:[#allocation2 + $0x20] sm:$0xff] %v2049
        %v2051 = vld [vmem:[#allocation2 + $0x28] sm:$0xff]
        %v2052 = vsel %vm2035, %v2000, %v2051
        %2053 = vst [vmem:[#allocation2 + $0x28] sm:$0xff] %v2052
        %v2054 = vld [vmem:[#allocation2 + $0x30] sm:$0xff]
        %v2055 = vsel %vm2035, %v2002, %v2054
        %2056 = vst [vmem:[#allocation2 + $0x30] sm:$0xff] %v2055
        %v2057 = vld [vmem:[#allocation2 + $0x38] sm:$0xff]
        %v2058 = vsel %vm2035, %v2004, %v2057
        %2059 = vst [vmem:[#allocation2 + $0x38] sm:$0xff] %v2058
        %v2060 = vld [vmem:[#allocation2 + $0x40] sm:$0xff]
        %v2061 = vsel %vm2035, %v2006, %v2060
        %2062 = vst [vmem:[#allocation2 + $0x40] sm:$0xff] %v2061
        %v2063 = vld [vmem:[#allocation2 + $0x48] sm:$0xff]
        %v2064 = vsel %vm2035, %v2008, %v2063
        %2065 = vst [vmem:[#allocation2 + $0x48] sm:$0xff] %v2064
        %v2066 = vld [vmem:[#allocation2 + $0x50] sm:$0xff]
        %v2067 = vsel %vm2035, %v2010, %v2066
        %2068 = vst [vmem:[#allocation2 + $0x50] sm:$0xff] %v2067
        %v2069 = vld [vmem:[#allocation2 + $0x58] sm:$0xff]
        %v2070 = vsel %vm2035, %v2012, %v2069
        %2071 = vst [vmem:[#allocation2 + $0x58] sm:$0xff] %v2070
        %v2072 = vld [vmem:[#allocation2 + $0x60] sm:$0xff]
        %v2073 = vsel %vm2035, %v2014, %v2072
        %2074 = vst [vmem:[#allocation2 + $0x60] sm:$0xff] %v2073
        %v2075 = vld [vmem:[#allocation2 + $0x68] sm:$0xff]
        %v2076 = vsel %vm2035, %v2016, %v2075
        %2077 = vst [vmem:[#allocation2 + $0x68] sm:$0xff] %v2076
        %v2078 = vld [vmem:[#allocation2 + $0x70] sm:$0xff]
        %v2079 = vsel %vm2035, %v2018, %v2078
        %2080 = vst [vmem:[#allocation2 + $0x70] sm:$0xff] %v2079
        %v2081 = vld [vmem:[%s1778] sm:$0xf]
        %v2082 = vld [vmem:[%s1778 + $0x4] sm:$0xf]
        %v2083 = vld [vmem:[%s1778 + $0x8] sm:$0xf]
        %v2084 = vld [vmem:[%s1778 + $0xc] sm:$0xf]
        %v2085 = vld [vmem:[%s1778 + $0x10] sm:$0xf]
        %v2086 = vld [vmem:[%s1778 + $0x14] sm:$0xf]
        %v2087 = vld [vmem:[%s1778 + $0x18] sm:$0xf]
        %v2088 = vld [vmem:[%s1778 + $0x1c] sm:$0xf]
        %v2089 = vld [vmem:[%s1778 + $0x20] sm:$0xf]
        %v2090 = vld [vmem:[%s1778 + $0x24] sm:$0xf]
        %v2091 = vld [vmem:[%s1778 + $0x28] sm:$0xf]
        %v2092 = vld [vmem:[%s1778 + $0x2c] sm:$0xf]
        %v2093 = vld [vmem:[%s1778 + $0x30] sm:$0xf]
        %v2094 = vld [vmem:[%s1778 + $0x34] sm:$0xf]
        %v2095 = vld [vmem:[%s1778 + $0x38] sm:$0xf]
        %v2096 = vld [vmem:[%s1778 + $0x3c] sm:$0xf]
        %v2097 = vld [vmem:[%s1778 + $0x40] sm:$0xf]
        %v2098 = vld [vmem:[%s1778 + $0x44] sm:$0xf]
        %v2099 = vld [vmem:[%s1778 + $0x48] sm:$0xf]
        %v2100 = vld [vmem:[%s1778 + $0x4c] sm:$0xf]
        %v2101 = vld [vmem:[%s1778 + $0x50] sm:$0xf]
        %v2102 = vld [vmem:[%s1778 + $0x54] sm:$0xf]
        %v2103 = vld [vmem:[%s1778 + $0x58] sm:$0xf]
        %v2104 = vld [vmem:[%s1778 + $0x5c] sm:$0xf]
        %v2105 = vld [vmem:[%s1778 + $0x60] sm:$0xf]
        %v2106 = vld [vmem:[%s1778 + $0x64] sm:$0xf]
        %v2107 = vld [vmem:[%s1778 + $0x68] sm:$0xf]
        %v2108 = vld [vmem:[%s1778 + $0x6c] sm:$0xf]
        %v2109 = vld [vmem:[%s1778 + $0x70] sm:$0xf]
        %v2110 = vld [vmem:[%s1778 + $0x74] sm:$0xf]
        %v2141 = vunpack.c.l.b16 %v2081
        %v2142 = vunpack.c.l.b16 %v2082
        %v2143 = vunpack.c.l.b16 %v2083
        %v2144 = vunpack.c.l.b16 %v2084
        %v2145 = vunpack.c.l.b16 %v2085
        %v2146 = vunpack.c.l.b16 %v2086
        %v2147 = vunpack.c.l.b16 %v2087
        %v2148 = vunpack.c.l.b16 %v2088
        %v2149 = vunpack.c.l.b16 %v2089
        %v2150 = vunpack.c.l.b16 %v2090
        %v2151 = vunpack.c.l.b16 %v2091
        %v2152 = vunpack.c.l.b16 %v2092
        %v2153 = vunpack.c.l.b16 %v2093
        %v2154 = vunpack.c.l.b16 %v2094
        %v2155 = vunpack.c.l.b16 %v2095
        %v2156 = vunpack.c.l.b16 %v2096
        %v2157 = vunpack.c.l.b16 %v2097
        %v2158 = vunpack.c.l.b16 %v2098
        %v2159 = vunpack.c.l.b16 %v2099
        %v2160 = vunpack.c.l.b16 %v2100
        %v2161 = vunpack.c.l.b16 %v2101
        %v2162 = vunpack.c.l.b16 %v2102
        %v2163 = vunpack.c.l.b16 %v2103
        %v2164 = vunpack.c.l.b16 %v2104
        %v2165 = vunpack.c.l.b16 %v2105
        %v2166 = vunpack.c.l.b16 %v2106
        %v2167 = vunpack.c.l.b16 %v2107
        %v2168 = vunpack.c.l.b16 %v2108
        %v2169 = vunpack.c.l.b16 %v2109
        %v2170 = vunpack.c.l.b16 %v2110
        %v2171 = vpack.c.b16 %v2142, %v2141
        %v2172 = vpack.c.b16 %v2144, %v2143
        %v2173 = vpack.c.b16 %v2146, %v2145
        %v2174 = vpack.c.b16 %v2148, %v2147
        %v2175 = vpack.c.b16 %v2150, %v2149
        %v2176 = vpack.c.b16 %v2152, %v2151
        %v2177 = vpack.c.b16 %v2154, %v2153
        %v2178 = vpack.c.b16 %v2156, %v2155
        %v2179 = vpack.c.b16 %v2158, %v2157
        %v2180 = vpack.c.b16 %v2160, %v2159
        %v2181 = vpack.c.b16 %v2162, %v2161
        %v2182 = vpack.c.b16 %v2164, %v2163
        %v2183 = vpack.c.b16 %v2166, %v2165
        %v2184 = vpack.c.b16 %v2168, %v2167
        %v2185 = vpack.c.b16 %v2170, %v2169
        %2186 = vrot.lane.b32.xlu0 %v2171, 28
        %v2187 = vpop.permute.xlu0 %2186
        %2188 = vrot.lane.b32.xlu0 %v2172, 28
        %v2189 = vpop.permute.xlu0 %2188
        %2190 = vrot.lane.b32.xlu0 %v2173, 28
        %v2191 = vpop.permute.xlu0 %2190
        %2192 = vrot.lane.b32.xlu0 %v2174, 28
        %v2193 = vpop.permute.xlu0 %2192
        %2194 = vrot.lane.b32.xlu0 %v2175, 28
        %v2195 = vpop.permute.xlu0 %2194
        %2196 = vrot.lane.b32.xlu0 %v2176, 28
        %v2197 = vpop.permute.xlu0 %2196
        %2198 = vrot.lane.b32.xlu0 %v2177, 28
        %v2199 = vpop.permute.xlu0 %2198
        %2200 = vrot.lane.b32.xlu0 %v2178, 28
        %v2201 = vpop.permute.xlu0 %2200
        %2202 = vrot.lane.b32.xlu0 %v2179, 28
        %v2203 = vpop.permute.xlu0 %2202
        %2204 = vrot.lane.b32.xlu0 %v2180, 28
        %v2205 = vpop.permute.xlu0 %2204
        %2206 = vrot.lane.b32.xlu0 %v2181, 28
        %v2207 = vpop.permute.xlu0 %2206
        %2208 = vrot.lane.b32.xlu0 %v2182, 28
        %v2209 = vpop.permute.xlu0 %2208
        %2210 = vrot.lane.b32.xlu0 %v2183, 28
        %v2211 = vpop.permute.xlu0 %2210
        %2212 = vrot.lane.b32.xlu0 %v2184, 28
        %v2213 = vpop.permute.xlu0 %2212
        %2214 = vrot.lane.b32.xlu0 %v2185, 28
        %v2215 = vpop.permute.xlu0 %2214
        %vm2231 = vcmask 261344
        %2232 = vst.msk [vmem:[#allocation2] sm:$0xff] %vm2231, %v2187
        %2233 = vst.msk [vmem:[#allocation2 + $0x8] sm:$0xff] %vm2231, %v2189
        %2234 = vst.msk [vmem:[#allocation2 + $0x10] sm:$0xff] %vm2231, %v2191
        %2235 = vst.msk [vmem:[#allocation2 + $0x18] sm:$0xff] %vm2231, %v2193
        %2236 = vst.msk [vmem:[#allocation2 + $0x20] sm:$0xff] %vm2231, %v2195
        %2237 = vst.msk [vmem:[#allocation2 + $0x28] sm:$0xff] %vm2231, %v2197
        %2238 = vst.msk [vmem:[#allocation2 + $0x30] sm:$0xff] %vm2231, %v2199
        %2239 = vst.msk [vmem:[#allocation2 + $0x38] sm:$0xff] %vm2231, %v2201
        %2240 = vst.msk [vmem:[#allocation2 + $0x40] sm:$0xff] %vm2231, %v2203
        %2241 = vst.msk [vmem:[#allocation2 + $0x48] sm:$0xff] %vm2231, %v2205
        %2242 = vst.msk [vmem:[#allocation2 + $0x50] sm:$0xff] %vm2231, %v2207
        %2243 = vst.msk [vmem:[#allocation2 + $0x58] sm:$0xff] %vm2231, %v2209
        %2244 = vst.msk [vmem:[#allocation2 + $0x60] sm:$0xff] %vm2231, %v2211
        %2245 = vst.msk [vmem:[#allocation2 + $0x68] sm:$0xff] %vm2231, %v2213
        %2246 = vst.msk [vmem:[#allocation2 + $0x70] sm:$0xff] %vm2231, %v2215
        %v2247 = vld [vmem:[%s1778] sm:$0xf]
        %v2248 = vld [vmem:[%s1778 + $0x4] sm:$0xf]
        %v2249 = vld [vmem:[%s1778 + $0x8] sm:$0xf]
        %v2250 = vld [vmem:[%s1778 + $0xc] sm:$0xf]
        %v2251 = vld [vmem:[%s1778 + $0x10] sm:$0xf]
        %v2252 = vld [vmem:[%s1778 + $0x14] sm:$0xf]
        %v2253 = vld [vmem:[%s1778 + $0x18] sm:$0xf]
        %v2254 = vld [vmem:[%s1778 + $0x1c] sm:$0xf]
        %v2255 = vld [vmem:[%s1778 + $0x20] sm:$0xf]
        %v2256 = vld [vmem:[%s1778 + $0x24] sm:$0xf]
        %v2257 = vld [vmem:[%s1778 + $0x28] sm:$0xf]
        %v2258 = vld [vmem:[%s1778 + $0x2c] sm:$0xf]
        %v2259 = vld [vmem:[%s1778 + $0x30] sm:$0xf]
        %v2260 = vld [vmem:[%s1778 + $0x34] sm:$0xf]
        %v2261 = vld [vmem:[%s1778 + $0x38] sm:$0xf]
        %v2262 = vld [vmem:[%s1778 + $0x3c] sm:$0xf]
        %v2263 = vld [vmem:[%s1778 + $0x40] sm:$0xf]
        %v2264 = vld [vmem:[%s1778 + $0x44] sm:$0xf]
        %v2265 = vld [vmem:[%s1778 + $0x48] sm:$0xf]
        %v2266 = vld [vmem:[%s1778 + $0x4c] sm:$0xf]
        %v2267 = vld [vmem:[%s1778 + $0x50] sm:$0xf]
        %v2268 = vld [vmem:[%s1778 + $0x54] sm:$0xf]
        %v2269 = vld [vmem:[%s1778 + $0x58] sm:$0xf]
        %v2270 = vld [vmem:[%s1778 + $0x5c] sm:$0xf]
        %v2271 = vld [vmem:[%s1778 + $0x60] sm:$0xf]
        %v2272 = vld [vmem:[%s1778 + $0x64] sm:$0xf]
        %v2273 = vld [vmem:[%s1778 + $0x68] sm:$0xf]
        %v2274 = vld [vmem:[%s1778 + $0x6c] sm:$0xf]
        %v2275 = vld [vmem:[%s1778 + $0x70] sm:$0xf]
        %v2276 = vld [vmem:[%s1778 + $0x74] sm:$0xf]
        %v2307 = vunpack.c.l.b16 %v2247
        %v2308 = vunpack.c.l.b16 %v2248
        %v2309 = vunpack.c.l.b16 %v2249
        %v2310 = vunpack.c.l.b16 %v2250
        %v2311 = vunpack.c.l.b16 %v2251
        %v2312 = vunpack.c.l.b16 %v2252
        %v2313 = vunpack.c.l.b16 %v2253
        %v2314 = vunpack.c.l.b16 %v2254
        %v2315 = vunpack.c.l.b16 %v2255
        %v2316 = vunpack.c.l.b16 %v2256
        %v2317 = vunpack.c.l.b16 %v2257
        %v2318 = vunpack.c.l.b16 %v2258
        %v2319 = vunpack.c.l.b16 %v2259
        %v2320 = vunpack.c.l.b16 %v2260
        %v2321 = vunpack.c.l.b16 %v2261
        %v2322 = vunpack.c.l.b16 %v2262
        %v2323 = vunpack.c.l.b16 %v2263
        %v2324 = vunpack.c.l.b16 %v2264
        %v2325 = vunpack.c.l.b16 %v2265
        %v2326 = vunpack.c.l.b16 %v2266
        %v2327 = vunpack.c.l.b16 %v2267
        %v2328 = vunpack.c.l.b16 %v2268
        %v2329 = vunpack.c.l.b16 %v2269
        %v2330 = vunpack.c.l.b16 %v2270
        %v2331 = vunpack.c.l.b16 %v2271
        %v2332 = vunpack.c.l.b16 %v2272
        %v2333 = vunpack.c.l.b16 %v2273
        %v2334 = vunpack.c.l.b16 %v2274
        %v2335 = vunpack.c.l.b16 %v2275
        %v2336 = vunpack.c.l.b16 %v2276
        %v2337 = vpack.c.b16 %v2308, %v2307
        %v2338 = vpack.c.b16 %v2310, %v2309
        %v2339 = vpack.c.b16 %v2312, %v2311
        %v2340 = vpack.c.b16 %v2314, %v2313
        %v2341 = vpack.c.b16 %v2316, %v2315
        %v2342 = vpack.c.b16 %v2318, %v2317
        %v2343 = vpack.c.b16 %v2320, %v2319
        %v2344 = vpack.c.b16 %v2322, %v2321
        %v2345 = vpack.c.b16 %v2324, %v2323
        %v2346 = vpack.c.b16 %v2326, %v2325
        %v2347 = vpack.c.b16 %v2328, %v2327
        %v2348 = vpack.c.b16 %v2330, %v2329
        %v2349 = vpack.c.b16 %v2332, %v2331
        %v2350 = vpack.c.b16 %v2334, %v2333
        %v2351 = vpack.c.b16 %v2336, %v2335
        %v2353 = vshrl.u32 %v2337, 16
        %v2355 = vshll.u32 %v2337, 16
        %v2357 = vrot.slane %v2355, 1
        %v2358 = vor.u32 %v2353, %v2357
        %v2360 = vshrl.u32 %v2338, 16
        %v2362 = vshll.u32 %v2338, 16
        %v2364 = vrot.slane %v2362, 1
        %v2365 = vor.u32 %v2360, %v2364
        %v2367 = vshrl.u32 %v2339, 16
        %v2369 = vshll.u32 %v2339, 16
        %v2371 = vrot.slane %v2369, 1
        %v2372 = vor.u32 %v2367, %v2371
        %v2374 = vshrl.u32 %v2340, 16
        %v2376 = vshll.u32 %v2340, 16
        %v2378 = vrot.slane %v2376, 1
        %v2379 = vor.u32 %v2374, %v2378
        %v2381 = vshrl.u32 %v2341, 16
        %v2383 = vshll.u32 %v2341, 16
        %v2385 = vrot.slane %v2383, 1
        %v2386 = vor.u32 %v2381, %v2385
        %v2388 = vshrl.u32 %v2342, 16
        %v2390 = vshll.u32 %v2342, 16
        %v2392 = vrot.slane %v2390, 1
        %v2393 = vor.u32 %v2388, %v2392
        %v2395 = vshrl.u32 %v2343, 16
        %v2397 = vshll.u32 %v2343, 16
        %v2399 = vrot.slane %v2397, 1
        %v2400 = vor.u32 %v2395, %v2399
        %v2402 = vshrl.u32 %v2344, 16
        %v2404 = vshll.u32 %v2344, 16
        %v2406 = vrot.slane %v2404, 1
        %v2407 = vor.u32 %v2402, %v2406
        %v2409 = vshrl.u32 %v2345, 16
        %v2411 = vshll.u32 %v2345, 16
        %v2413 = vrot.slane %v2411, 1
        %v2414 = vor.u32 %v2409, %v2413
        %v2416 = vshrl.u32 %v2346, 16
        %v2418 = vshll.u32 %v2346, 16
        %v2420 = vrot.slane %v2418, 1
        %v2421 = vor.u32 %v2416, %v2420
        %v2423 = vshrl.u32 %v2347, 16
        %v2425 = vshll.u32 %v2347, 16
        %v2427 = vrot.slane %v2425, 1
        %v2428 = vor.u32 %v2423, %v2427
        %v2430 = vshrl.u32 %v2348, 16
        %v2432 = vshll.u32 %v2348, 16
        %v2434 = vrot.slane %v2432, 1
        %v2435 = vor.u32 %v2430, %v2434
        %v2437 = vshrl.u32 %v2349, 16
        %v2439 = vshll.u32 %v2349, 16
        %v2441 = vrot.slane %v2439, 1
        %v2442 = vor.u32 %v2437, %v2441
        %v2444 = vshrl.u32 %v2350, 16
        %v2446 = vshll.u32 %v2350, 16
        %v2448 = vrot.slane %v2446, 1
        %v2449 = vor.u32 %v2444, %v2448
        %v2451 = vshrl.u32 %v2351, 16
        %v2453 = vshll.u32 %v2351, 16
        %v2455 = vrot.slane %v2453, 1
        %v2456 = vor.u32 %v2451, %v2455
        %2457 = vrot.lane.b32.xlu0 %v2358, 32
        %v2458 = vpop.permute.xlu0 %2457
        %2459 = vrot.lane.b32.xlu0 %v2365, 32
        %v2460 = vpop.permute.xlu0 %2459
        %2461 = vrot.lane.b32.xlu0 %v2372, 32
        %v2462 = vpop.permute.xlu0 %2461
        %2463 = vrot.lane.b32.xlu0 %v2379, 32
        %v2464 = vpop.permute.xlu0 %2463
        %2465 = vrot.lane.b32.xlu0 %v2386, 32
        %v2466 = vpop.permute.xlu0 %2465
        %2467 = vrot.lane.b32.xlu0 %v2393, 32
        %v2468 = vpop.permute.xlu0 %2467
        %2469 = vrot.lane.b32.xlu0 %v2400, 32
        %v2470 = vpop.permute.xlu0 %2469
        %2471 = vrot.lane.b32.xlu0 %v2407, 32
        %v2472 = vpop.permute.xlu0 %2471
        %2473 = vrot.lane.b32.xlu0 %v2414, 32
        %v2474 = vpop.permute.xlu0 %2473
        %2475 = vrot.lane.b32.xlu0 %v2421, 32
        %v2476 = vpop.permute.xlu0 %2475
        %2477 = vrot.lane.b32.xlu0 %v2428, 32
        %v2478 = vpop.permute.xlu0 %2477
        %2479 = vrot.lane.b32.xlu0 %v2435, 32
        %v2480 = vpop.permute.xlu0 %2479
        %2481 = vrot.lane.b32.xlu0 %v2442, 32
        %v2482 = vpop.permute.xlu0 %2481
        %2483 = vrot.lane.b32.xlu0 %v2449, 32
        %v2484 = vpop.permute.xlu0 %2483
        %2485 = vrot.lane.b32.xlu0 %v2456, 32
        %v2486 = vpop.permute.xlu0 %2485
        %vm2502 = vcmask 294144
        %vm2503 = vmand %vm2502, %vm910
        %v2504 = vld [vmem:[#allocation2] sm:$0xff]
        %v2505 = vsel %vm2503, %v2458, %v2504
        %2506 = vst [vmem:[#allocation2] sm:$0xff] %v2505
        %v2507 = vld [vmem:[#allocation2 + $0x8] sm:$0xff]
        %v2508 = vsel %vm2503, %v2460, %v2507
        %2509 = vst [vmem:[#allocation2 + $0x8] sm:$0xff] %v2508
        %v2510 = vld [vmem:[#allocation2 + $0x10] sm:$0xff]
        %v2511 = vsel %vm2503, %v2462, %v2510
        %2512 = vst [vmem:[#allocation2 + $0x10] sm:$0xff] %v2511
        %v2513 = vld [vmem:[#allocation2 + $0x18] sm:$0xff]
        %v2514 = vsel %vm2503, %v2464, %v2513
        %2515 = vst [vmem:[#allocation2 + $0x18] sm:$0xff] %v2514
        %v2516 = vld [vmem:[#allocation2 + $0x20] sm:$0xff]
        %v2517 = vsel %vm2503, %v2466, %v2516
        %2518 = vst [vmem:[#allocation2 + $0x20] sm:$0xff] %v2517
        %v2519 = vld [vmem:[#allocation2 + $0x28] sm:$0xff]
        %v2520 = vsel %vm2503, %v2468, %v2519
        %2521 = vst [vmem:[#allocation2 + $0x28] sm:$0xff] %v2520
        %v2522 = vld [vmem:[#allocation2 + $0x30] sm:$0xff]
        %v2523 = vsel %vm2503, %v2470, %v2522
        %2524 = vst [vmem:[#allocation2 + $0x30] sm:$0xff] %v2523
        %v2525 = vld [vmem:[#allocation2 + $0x38] sm:$0xff]
        %v2526 = vsel %vm2503, %v2472, %v2525
        %2527 = vst [vmem:[#allocation2 + $0x38] sm:$0xff] %v2526
        %v2528 = vld [vmem:[#allocation2 + $0x40] sm:$0xff]
        %v2529 = vsel %vm2503, %v2474, %v2528
        %2530 = vst [vmem:[#allocation2 + $0x40] sm:$0xff] %v2529
        %v2531 = vld [vmem:[#allocation2 + $0x48] sm:$0xff]
        %v2532 = vsel %vm2503, %v2476, %v2531
        %2533 = vst [vmem:[#allocation2 + $0x48] sm:$0xff] %v2532
        %v2534 = vld [vmem:[#allocation2 + $0x50] sm:$0xff]
        %v2535 = vsel %vm2503, %v2478, %v2534
        %2536 = vst [vmem:[#allocation2 + $0x50] sm:$0xff] %v2535
        %v2537 = vld [vmem:[#allocation2 + $0x58] sm:$0xff]
        %v2538 = vsel %vm2503, %v2480, %v2537
        %2539 = vst [vmem:[#allocation2 + $0x58] sm:$0xff] %v2538
        %v2540 = vld [vmem:[#allocation2 + $0x60] sm:$0xff]
        %v2541 = vsel %vm2503, %v2482, %v2540
        %2542 = vst [vmem:[#allocation2 + $0x60] sm:$0xff] %v2541
        %v2543 = vld [vmem:[#allocation2 + $0x68] sm:$0xff]
        %v2544 = vsel %vm2503, %v2484, %v2543
        %2545 = vst [vmem:[#allocation2 + $0x68] sm:$0xff] %v2544
        %v2546 = vld [vmem:[#allocation2 + $0x70] sm:$0xff]
        %v2547 = vsel %vm2503, %v2486, %v2546
        %2548 = vst [vmem:[#allocation2 + $0x70] sm:$0xff] %v2547
        %v2549 = vld [vmem:[#allocation2] sm:$0xff]
        %v2550 = vld [vmem:[#allocation2 + $0x8] sm:$0xff]
        %v2551 = vld [vmem:[#allocation2 + $0x10] sm:$0xff]
        %v2552 = vld [vmem:[#allocation2 + $0x18] sm:$0xff]
        %v2553 = vld [vmem:[#allocation2 + $0x20] sm:$0xff]
        %v2554 = vld [vmem:[#allocation2 + $0x28] sm:$0xff]
        %v2555 = vld [vmem:[#allocation2 + $0x30] sm:$0xff]
        %v2556 = vld [vmem:[#allocation2 + $0x38] sm:$0xff]
        %v2557 = vld [vmem:[#allocation2 + $0x40] sm:$0xff]
        %v2558 = vld [vmem:[#allocation2 + $0x48] sm:$0xff]
        %v2559 = vld [vmem:[#allocation2 + $0x50] sm:$0xff]
        %v2560 = vld [vmem:[#allocation2 + $0x58] sm:$0xff]
        %v2561 = vld [vmem:[#allocation2 + $0x60] sm:$0xff]
        %v2562 = vld [vmem:[#allocation2 + $0x68] sm:$0xff]
        %v2563 = vld [vmem:[#allocation2 + $0x70] sm:$0xff]
        %v2564 = vld [vmem:[#allocation2 + $0x78] sm:$0xff]
        %v2565 = vld [vmem:[%s1] sm:$0xf]
        %v2567 = vsel %vm197, %v2565, 0
        %v2570 = vsel %vm197, %v2549, 0
        %v2573 = vsel %vm197, %v2550, 0
        %v2576 = vsel %vm197, %v2551, 0
        %v2579 = vsel %vm197, %v2552, 0
        %v2582 = vsel %vm197, %v2553, 0
        %v2585 = vsel %vm197, %v2554, 0
        %v2588 = vsel %vm197, %v2555, 0
        %v2591 = vsel %vm197, %v2556, 0
        %v2594 = vsel %vm197, %v2557, 0
        %v2597 = vsel %vm197, %v2558, 0
        %v2600 = vsel %vm197, %v2559, 0
        %v2603 = vsel %vm197, %v2560, 0
        %v2606 = vsel %vm197, %v2561, 0
        %v2609 = vsel %vm197, %v2562, 0
        %v2612 = vsel %vm197, %v2563, 0
        %v2615 = vsel %vm197, %v2564, 0
        %2617 = vmatprep.subr.bf16.mxu0 0
        %2618 = vmatpush1.bf16.xpose.msra.mxu0 %v2570
        %2619 = vmatprep.subr.bf16.mxu0 0
        %2620 = vmatpush1.bf16.xpose.msra.mxu0 %v2573
        %2621 = vmatprep.subr.bf16.mxu0 0
        %2622 = vmatpush1.bf16.xpose.msra.mxu0 %v2576
        %2623 = vmatprep.subr.bf16.mxu0 0
        %2624 = vmatpush1.bf16.xpose.msra.mxu0 %v2579
        %2625 = vmatprep.subr.bf16.mxu0 0
        %2626 = vmatpush1.bf16.xpose.msra.mxu0 %v2582
        %2627 = vmatprep.subr.bf16.mxu0 0
        %2628 = vmatpush1.bf16.xpose.msra.mxu0 %v2585
        %2629 = vmatprep.subr.bf16.mxu0 0
        %2630 = vmatpush1.bf16.xpose.msra.mxu0 %v2588
        %2631 = vmatprep.subr.bf16.mxu0 0
        %2632 = vmatpush1.bf16.xpose.msra.mxu0 %v2591
        %2633 = vmatprep.subr.bf16.mxu0 0
        %2634 = vmatpush1.bf16.xpose.msra.mxu0 %v2594
        %2635 = vmatprep.subr.bf16.mxu0 0
        %2636 = vmatpush1.bf16.xpose.msra.mxu0 %v2597
        %2637 = vmatprep.subr.bf16.mxu0 0
        %2638 = vmatpush1.bf16.xpose.msra.mxu0 %v2600
        %2639 = vmatprep.subr.bf16.mxu0 0
        %2640 = vmatpush1.bf16.xpose.msra.mxu0 %v2603
        %2641 = vmatprep.subr.bf16.mxu0 0
        %2642 = vmatpush1.bf16.xpose.msra.mxu0 %v2606
        %2643 = vmatprep.subr.bf16.mxu0 0
        %2644 = vmatpush1.bf16.xpose.msra.mxu0 %v2609
        %2645 = vmatprep.subr.bf16.mxu0 0
        %2646 = vmatpush1.bf16.xpose.msra.mxu0 %v2612
        %2647 = vmatprep.subr.bf16.mxu0 0
        %2648 = vmatpush1.bf16.xpose.msra.mxu0 %v2615
        %2649 = vmatprep.mubr.bf16.mxu0 0
        %2650 = vmatmul.mubr.bf16.gmra.mrb[0].mxu0 %v2567
        %v2651 = vpop.f32.mrb[0].mxu0
        %v2652 = vadd.f32 0.0, %v2651
        %v2653 = vpop.f32.mrb[0].mxu0
        %v2654 = vadd.f32 0.0, %v2653
        %v2655 = vpop.f32.mrb[0].mxu0
        %v2656 = vpop.f32.mrb[0].mxu0
        %2657 = vdwg.mxu0
        %v2658 = vld [vmem:[%s2] sm:$0xff]
        %2660 = vset.pattern.permute.xlu0 0
        %2661 = vperm.xlu0 %2660, %v2658
        %v2662 = vpop.permute.xlu0 %2661
        %v2664 = vmul.f32 %v2652, %v2662
        %v2665 = vmul.f32 %v2654, %v2662
        %v2666 = vld [vmem:[%s3] sm:$0xff]
        %2668 = vset.pattern.permute.xlu0 0
        %2669 = vperm.xlu0 %2668, %v2666
        %v2670 = vpop.permute.xlu0 %2669
        %v2672 = vadd.f32 %v2664, %v2670
        %v2673 = vadd.f32 %v2665, %v2670
        %v2674 = vsub.f32 0.0, %v2672
        %v2675 = vsub.f32 0.0, %v2673
        %v2676 = vmul.f32 %v2674, 1.442695
        %v2677 = vpow.pop %v2676
        %v2678 = vmul.f32 %v2675, 1.442695
        %v2679 = vpow.pop %v2678
        %v2680 = vadd.f32 %v2677, 1.0
        %v2681 = vadd.f32 %v2679, 1.0
        %v2682 = vrcp.pop %v2680
        %v2683 = vmul.f32 1.0, %v2682
        %v2684 = vrcp.pop %v2681
        %v2685 = vmul.f32 1.0, %v2684
        %v2686 = vmul.f32 %v2672, %v2683
        %v2687 = vmul.f32 %v2673, %v2685
        %2688 = vst [vmem:[%s190] sm:$0xff] %v2686
        %2689 = vst [vmem:[%s190 + $0x8] sm:$0xff] %v2687
        %s2690 = sand.u32 %s115, 1
        %s2691 = scalar_lea.sflag [#allocation4], %s2690
        %s2692 = sand.u32 %s115, 1
        %s2693 = smul.addr %s2692, 16
        %s2694 = scalar_lea.vmem [#allocation3], %s2693
        // Predicated region
        $region37: #{tpu_custom_call.1} parent=35 // pred_check
          %p2695 = pneg %p125
        $region38: #{tpu_custom_call.1} parent=35 // pred_check_branch
          %2697 = sbr.rel (%p2695) target = $region40
        $region39: #{tpu_custom_call.1} parent=35 // pred_region
          %s2699 = ssub.s32 256, 256
          %2700 = vsyncadd %s2691, %s2699
          %s2701 = smul.addr %s18, 2
          %s2702 = smul.addr %s2701, 128
          %s2703 = scalar_lea.hbm %s4, %s2702
          %s2705 = sshll.u32 %s2694, 4
          %s2706 = int_to_ptr.vmem [resolvable:$true] %s2705
          %2708 = dma.vmem_to_hbm [thread:$0]  %s2706, 256, %s2703, %s2691
        $region40: #{tpu_custom_call.1} parent=35 // pred_fallthru
          _
      $region36: #{tpu_custom_call.1} parent=5 // pred_fallthru
        _
      %p2709 = scmp.le.s32.totalorder 2, %s13
      // Predicated region
      $region41: #{tpu_custom_call.1} parent=5 // pred_check
        %p2710 = pneg %p2709
      $region42: #{tpu_custom_call.1} parent=5 // pred_check_branch
        %2712 = sbr.rel (%p2710) target = $region44
      $region43: #{tpu_custom_call.1} parent=5 // pred_region
        %s2713 = ssub.s32 %s13, 2
        // Predicated region
        $region45: #{tpu_custom_call.1} parent=43 // pred_check
          %p2714 = pneg %p131
        $region46: #{tpu_custom_call.1} parent=43 // pred_check_branch
          %2716 = sbr.rel (%p2714) target = $region48
        $region47: #{tpu_custom_call.1} parent=43 // pred_region
          %s2717 = sand.u32 %s116, 1
          %s2718 = scalar_lea.sflag [#allocation4], %s2717
          %s2719 = sand.u32 %s116, 1
          %s2720 = smul.addr %s2719, 16
          %s2721 = scalar_lea.vmem [#allocation3], %s2720
          %2722 = dma.done %s2718, 256
        $region48: #{tpu_custom_call.1} parent=43 // pred_fallthru
          _
      $region44: #{tpu_custom_call.1} parent=5 // pred_fallthru
        _
    $region6: #{tpu_custom_call.1} parent=1 // loop_footer
      %s17 = sadd.s32 1, %s13
    $region7: #{tpu_custom_call.1} parent=1 // loop_footer_branch
      %12 = sbr.rel target = $region3
    $region8: #{tpu_custom_call.1} parent=1 // loop_exit
      _
    %2723 = vsyncpa [#allocation4], 1
    %s2724 = scalar_lea.sflag [#allocation4], 1
    %2725 = vsyncpa %s2724, 1

</llo_original>
